<compile_context>
chip_gen: v5e
topology: v5e:2x2
jax: 0.10.0
libtpu: 0.0.40
codegen_flags: <defaults>
</compile_context>

<pallas_src>
import jax
import jax.numpy as jnp
from jax.experimental import pallas as pl
from jax.experimental.pallas import tpu as pltpu


def _make_ignite_kernel(n, h, w):
    """Builds the fused conv->relu->pool->linear kernel for static (n, h, w)."""
    hw = h * w
    nhw = n * hw

    def kernel(x_ref, wc_ref, bc_ref, wl_ref, bl_ref, o_ref):
        # x_ref : (CHP, N*HW) channel-major image, channels zero-padded to CHP
        # wc_ref: (C, 9*CHP)  conv weight, (kh,kw)-major / in-channel-minor
        # bc_ref: (C, 1)      conv bias
        # wl_ref: (C, NCLS)   linear weight^T, pre-scaled by 1/HW
        # bl_ref: (1, NCLS)   linear bias
        # o_ref : (N, NCLS)   logits
        x = x_ref[...]
        chp = x.shape[0]

        # Per-lane spatial coordinates (within each image) for the padding masks.
        lane = jax.lax.broadcasted_iota(jnp.int32, (chp, nhw), 1)
        if (hw & (hw - 1)) == 0 and (w & (w - 1)) == 0:
            sp = jnp.bitwise_and(lane, hw - 1)                 # pos within image
            hh = jnp.right_shift(sp, w.bit_length() - 1)       # row
            ww = jnp.bitwise_and(sp, w - 1)                    # col
        else:  # generic (non power-of-two) fallback
            sp = lane % hw
            hh = sp // w
            ww = sp % w

        # In-VMEM im2col: 9 lane-rolled + edge-masked views of the image,
        # stacked along sublanes -> (9*CHP, N*HW).  Rolls land on the XLU,
        # masks on the VPU; nothing extra touches HBM.
        pieces = []
        for kh in range(3):
            for kw in range(3):
                off = (kh - 1) * w + (kw - 1)   # flattened spatial offset of this tap
                # want xs[:, l] == x[:, l + off]  (np.roll semantics => shift = -off);
                # any wrap across row/image/array edges is exactly the zero-pad
                # region and is killed by the mask below.
                xs = x if off == 0 else pltpu.roll(x, (-off) % nhw, axis=1)
                valid = ((hh + (kh - 1) >= 0) & (hh + (kh - 1) < h) &
                         (ww + (kw - 1) >= 0) & (ww + (kw - 1) < w))
                pieces.append(jnp.where(valid, xs, 0.0))
        patches = jnp.concatenate(pieces, axis=0)              # (9*CHP, N*HW)

        # Whole-batch conv as a single MXU matmul; N*HW is the lane axis.
        conv = jnp.dot(wc_ref[...], patches,
                       preferred_element_type=jnp.float32,
                       precision=jax.lax.Precision.HIGHEST)    # (C, N*HW)
        act = jnp.maximum(conv + bc_ref[...], 0.0)              # bias + ReLU (VPU)

        # Global average pool (sum; the 1/HW is folded into wl) + classifier head.
        wl = wl_ref[...]                                        # (C, NCLS)
        rows = []
        for i in range(n):                                      # n is tiny & static
            pooled = jnp.sum(act[:, i * hw:(i + 1) * hw],
                             axis=1, keepdims=True)             # (C, 1), lane reduce
            rows.append(jnp.sum(pooled * wl, axis=0, keepdims=True))   # (1, NCLS)
        logits = jnp.concatenate(rows, axis=0) + bl_ref[...]    # (N, NCLS)
        o_ref[...] = logits.astype(o_ref.dtype)                 # one batched store

    return kernel


def pack_ignite_params(w_conv, b_conv, w_lin, b_lin, h, w):
    """One-time parameter packing (call once, outside the per-forward jit)."""
    c, ch, kh, kw = w_conv.shape
    assert (kh, kw) == (3, 3), "kernel assumes a 3x3 conv"
    n_class = w_lin.shape[0]
    chp = ((ch + 7) // 8) * 8                       # pad in-channels to a sublane multiple
    # (kh,kw)-major / in-channel-minor, zero-padded channels -> (C, 9*CHP);
    # matches the in-kernel patch stacking order.
    wc = jnp.transpose(w_conv, (2, 3, 0, 1)).reshape(9, c, ch)
    wc = jnp.pad(wc, ((0, 0), (0, 0), (0, chp - ch)))
    wc = jnp.transpose(wc, (1, 0, 2)).reshape(c, 9 * chp).astype(jnp.float32)
    bc = b_conv.reshape(c, 1).astype(jnp.float32)
    wl = (w_lin.T / float(h * w)).astype(jnp.float32)   # fold the 1/HW of the mean-pool
    bl = b_lin.reshape(1, n_class).astype(jnp.float32)
    return wc, bc, wl, bl


@jax.jit
def ignite_forward(x_nchw, wc, bc, wl, bl):
    """x_nchw: [N, ch, H, W] f32; (wc, bc, wl, bl) from pack_ignite_params.
    Returns logits [N, n_class]."""
    n, ch, h, w = x_nchw.shape
    c = wc.shape[0]
    chp = wc.shape[1] // 9
    n_class = wl.shape[1]
    nhw = n * h * w

    # Only per-call glue: channel-major flatten + channel zero-pad (one small
    # fused copy; the 9x im2col expansion happens inside the kernel, in VMEM).
    x_pack = jnp.transpose(x_nchw, (1, 0, 2, 3)).reshape(ch, nhw)
    x_pack = jnp.pad(x_pack, ((0, chp - ch), (0, 0)))

    kernel = _make_ignite_kernel(n, h, w)
    cost = pl.CostEstimate(
        flops=2 * c * 9 * chp * nhw + 2 * n * c * n_class,
        transcendentals=0,
        bytes_accessed=4 * (chp * nhw + c * 9 * chp + c + c * n_class
                            + n_class + n * n_class))

    return pl.pallas_call(
        kernel,
        out_shape=jax.ShapeDtypeStruct((n, n_class), jnp.float32),
        in_specs=[pl.BlockSpec(memory_space=pltpu.MemorySpace.VMEM)] * 5,
        out_specs=pl.BlockSpec(memory_space=pltpu.MemorySpace.VMEM),
        cost_estimate=cost,
    )(x_pack, wc, bc, wl, bl)


def _reference(x_nchw, w_conv, b_conv, w_lin, b_lin):
    """Pure-JAX reference of the same forward pass (f32, highest precision)."""
    conv = jax.lax.conv_general_dilated(
        x_nchw, w_conv, window_strides=(1, 1), padding="SAME",
        dimension_numbers=("NCHW", "OIHW", "NCHW"),
        precision=jax.lax.Precision.HIGHEST)
    act = jnp.maximum(conv + b_conv[None, :, None, None], 0.0)
    pooled = act.mean(axis=(2, 3))                              # [N, c]
    return jnp.dot(pooled, w_lin.T,
                   precision=jax.lax.Precision.HIGHEST) + b_lin[None, :]


if __name__ == "__main__":
    # Small shapes consistent with IgniteModel(model_class, lr, loss, c, n_class=10, ch=3)
    N, CH, H, W = 2, 3, 16, 16
    C, N_CLASS = 8, 10

    key = jax.random.PRNGKey(0)
    kx, kwc, kbc, kwl, kbl = jax.random.split(key, 5)
    x = jax.random.normal(kx, (N, CH, H, W), dtype=jnp.float32)
    w_conv = jax.random.normal(kwc, (C, CH, 3, 3), dtype=jnp.float32) * 0.1
    b_conv = jax.random.normal(kbc, (C,), dtype=jnp.float32) * 0.1
    w_lin = jax.random.normal(kwl, (N_CLASS, C), dtype=jnp.float32) * 0.1
    b_lin = jax.random.normal(kbl, (N_CLASS,), dtype=jnp.float32) * 0.1

    packed = pack_ignite_params(w_conv, b_conv, w_lin, b_lin, H, W)   # one-time packing
    out = jax.block_until_ready(ignite_forward(x, *packed))

    ref = _reference(x, w_conv, b_conv, w_lin, b_lin)
    assert out.shape == (N, N_CLASS), out.shape
    # HIGHEST precision on both sides keeps the true error ~1e-6; 5e-4 also
    # covers a worst-case single-pass-bf16 matmul fallback on any generation.
    assert jnp.allclose(out, ref, atol=5e-4, rtol=5e-4), (out, ref)
    print("KERNEL_OK")
</pallas_src>

<mosaic_0001>
module attributes {stable_mosaic.version = 11 : i64} {
  func.func @kernel(%arg0: memref<8x512xf32, #tpu.memory_space<vmem>>, %arg1: memref<8x72xf32, #tpu.memory_space<vmem>>, %arg2: memref<8x1xf32, #tpu.memory_space<vmem>>, %arg3: memref<8x10xf32, #tpu.memory_space<vmem>>, %arg4: memref<1x10xf32, #tpu.memory_space<vmem>>, %arg5: memref<2x10xf32, #tpu.memory_space<vmem>>) attributes {dimension_semantics = [], scalar_prefetch = 0 : i64, scratch_operands = 0 : i64, tpu.core_type = #tpu.core_type<tc>} {
    %c0 = arith.constant 0 : index
    %c0_0 = arith.constant 0 : index
    %0 = vector.load %arg0[%c0, %c0_0] : memref<8x512xf32, #tpu.memory_space<vmem>>, vector<8x512xf32>
    %1 = tpu.iota {dimensions = array<i32: 1>} : vector<8x512xi32>
    %c255_i32 = arith.constant 255 : i32
    %2 = vector.broadcast %c255_i32 : i32 to vector<8x512xi32>
    %3 = arith.andi %1, %2 : vector<8x512xi32>
    %c4_i32 = arith.constant 4 : i32
    %4 = vector.broadcast %c4_i32 : i32 to vector<8x512xi32>
    %5 = arith.shrsi %3, %4 : vector<8x512xi32>
    %c15_i32 = arith.constant 15 : i32
    %6 = vector.broadcast %c15_i32 : i32 to vector<8x512xi32>
    %7 = arith.andi %3, %6 : vector<8x512xi32>
    %c17_i32 = arith.constant 17 : i32
    %8 = tpu.dynamic_rotate %0 by %c17_i32 dim 1 : vector<8x512xf32>, i32 -> vector<8x512xf32>
    %c-1_i32 = arith.constant -1 : i32
    %9 = vector.broadcast %c-1_i32 : i32 to vector<8x512xi32>
    %10 = arith.addi %5, %9 : vector<8x512xi32>
    %c0_i32 = arith.constant 0 : i32
    %11 = vector.broadcast %c0_i32 : i32 to vector<8x512xi32>
    %12 = arith.cmpi sge, %10, %11 : vector<8x512xi32>
    %c-1_i32_1 = arith.constant -1 : i32
    %13 = vector.broadcast %c-1_i32_1 : i32 to vector<8x512xi32>
    %14 = arith.addi %5, %13 : vector<8x512xi32>
    %c16_i32 = arith.constant 16 : i32
    %15 = vector.broadcast %c16_i32 : i32 to vector<8x512xi32>
    %16 = arith.cmpi slt, %14, %15 : vector<8x512xi32>
    %17 = arith.andi %12, %16 : vector<8x512xi1>
    %c-1_i32_2 = arith.constant -1 : i32
    %18 = vector.broadcast %c-1_i32_2 : i32 to vector<8x512xi32>
    %19 = arith.addi %7, %18 : vector<8x512xi32>
    %c0_i32_3 = arith.constant 0 : i32
    %20 = vector.broadcast %c0_i32_3 : i32 to vector<8x512xi32>
    %21 = arith.cmpi sge, %19, %20 : vector<8x512xi32>
    %22 = arith.andi %17, %21 : vector<8x512xi1>
    %c-1_i32_4 = arith.constant -1 : i32
    %23 = vector.broadcast %c-1_i32_4 : i32 to vector<8x512xi32>
    %24 = arith.addi %7, %23 : vector<8x512xi32>
    %c16_i32_5 = arith.constant 16 : i32
    %25 = vector.broadcast %c16_i32_5 : i32 to vector<8x512xi32>
    %26 = arith.cmpi slt, %24, %25 : vector<8x512xi32>
    %27 = arith.andi %22, %26 : vector<8x512xi1>
    %cst = arith.constant 0.000000e+00 : f32
    %28 = vector.broadcast %cst : f32 to vector<8x512xf32>
    %29 = arith.select %27, %8, %28 : vector<8x512xi1>, vector<8x512xf32>
    %c16_i32_6 = arith.constant 16 : i32
    %30 = tpu.dynamic_rotate %0 by %c16_i32_6 dim 1 : vector<8x512xf32>, i32 -> vector<8x512xf32>
    %c-1_i32_7 = arith.constant -1 : i32
    %31 = vector.broadcast %c-1_i32_7 : i32 to vector<8x512xi32>
    %32 = arith.addi %5, %31 : vector<8x512xi32>
    %c0_i32_8 = arith.constant 0 : i32
    %33 = vector.broadcast %c0_i32_8 : i32 to vector<8x512xi32>
    %34 = arith.cmpi sge, %32, %33 : vector<8x512xi32>
    %c-1_i32_9 = arith.constant -1 : i32
    %35 = vector.broadcast %c-1_i32_9 : i32 to vector<8x512xi32>
    %36 = arith.addi %5, %35 : vector<8x512xi32>
    %c16_i32_10 = arith.constant 16 : i32
    %37 = vector.broadcast %c16_i32_10 : i32 to vector<8x512xi32>
    %38 = arith.cmpi slt, %36, %37 : vector<8x512xi32>
    %39 = arith.andi %34, %38 : vector<8x512xi1>
    %c0_i32_11 = arith.constant 0 : i32
    %40 = vector.broadcast %c0_i32_11 : i32 to vector<8x512xi32>
    %41 = arith.addi %7, %40 : vector<8x512xi32>
    %c0_i32_12 = arith.constant 0 : i32
    %42 = vector.broadcast %c0_i32_12 : i32 to vector<8x512xi32>
    %43 = arith.cmpi sge, %41, %42 : vector<8x512xi32>
    %44 = arith.andi %39, %43 : vector<8x512xi1>
    %c0_i32_13 = arith.constant 0 : i32
    %45 = vector.broadcast %c0_i32_13 : i32 to vector<8x512xi32>
    %46 = arith.addi %7, %45 : vector<8x512xi32>
    %c16_i32_14 = arith.constant 16 : i32
    %47 = vector.broadcast %c16_i32_14 : i32 to vector<8x512xi32>
    %48 = arith.cmpi slt, %46, %47 : vector<8x512xi32>
    %49 = arith.andi %44, %48 : vector<8x512xi1>
    %cst_15 = arith.constant 0.000000e+00 : f32
    %50 = vector.broadcast %cst_15 : f32 to vector<8x512xf32>
    %51 = arith.select %49, %30, %50 : vector<8x512xi1>, vector<8x512xf32>
    %c15_i32_16 = arith.constant 15 : i32
    %52 = tpu.dynamic_rotate %0 by %c15_i32_16 dim 1 : vector<8x512xf32>, i32 -> vector<8x512xf32>
    %c-1_i32_17 = arith.constant -1 : i32
    %53 = vector.broadcast %c-1_i32_17 : i32 to vector<8x512xi32>
    %54 = arith.addi %5, %53 : vector<8x512xi32>
    %c0_i32_18 = arith.constant 0 : i32
    %55 = vector.broadcast %c0_i32_18 : i32 to vector<8x512xi32>
    %56 = arith.cmpi sge, %54, %55 : vector<8x512xi32>
    %c-1_i32_19 = arith.constant -1 : i32
    %57 = vector.broadcast %c-1_i32_19 : i32 to vector<8x512xi32>
    %58 = arith.addi %5, %57 : vector<8x512xi32>
    %c16_i32_20 = arith.constant 16 : i32
    %59 = vector.broadcast %c16_i32_20 : i32 to vector<8x512xi32>
    %60 = arith.cmpi slt, %58, %59 : vector<8x512xi32>
    %61 = arith.andi %56, %60 : vector<8x512xi1>
    %c1_i32 = arith.constant 1 : i32
    %62 = vector.broadcast %c1_i32 : i32 to vector<8x512xi32>
    %63 = arith.addi %7, %62 : vector<8x512xi32>
    %c0_i32_21 = arith.constant 0 : i32
    %64 = vector.broadcast %c0_i32_21 : i32 to vector<8x512xi32>
    %65 = arith.cmpi sge, %63, %64 : vector<8x512xi32>
    %66 = arith.andi %61, %65 : vector<8x512xi1>
    %c1_i32_22 = arith.constant 1 : i32
    %67 = vector.broadcast %c1_i32_22 : i32 to vector<8x512xi32>
    %68 = arith.addi %7, %67 : vector<8x512xi32>
    %c16_i32_23 = arith.constant 16 : i32
    %69 = vector.broadcast %c16_i32_23 : i32 to vector<8x512xi32>
    %70 = arith.cmpi slt, %68, %69 : vector<8x512xi32>
    %71 = arith.andi %66, %70 : vector<8x512xi1>
    %cst_24 = arith.constant 0.000000e+00 : f32
    %72 = vector.broadcast %cst_24 : f32 to vector<8x512xf32>
    %73 = arith.select %71, %52, %72 : vector<8x512xi1>, vector<8x512xf32>
    %c1_i32_25 = arith.constant 1 : i32
    %74 = tpu.dynamic_rotate %0 by %c1_i32_25 dim 1 : vector<8x512xf32>, i32 -> vector<8x512xf32>
    %c0_i32_26 = arith.constant 0 : i32
    %75 = vector.broadcast %c0_i32_26 : i32 to vector<8x512xi32>
    %76 = arith.addi %5, %75 : vector<8x512xi32>
    %c0_i32_27 = arith.constant 0 : i32
    %77 = vector.broadcast %c0_i32_27 : i32 to vector<8x512xi32>
    %78 = arith.cmpi sge, %76, %77 : vector<8x512xi32>
    %c0_i32_28 = arith.constant 0 : i32
    %79 = vector.broadcast %c0_i32_28 : i32 to vector<8x512xi32>
    %80 = arith.addi %5, %79 : vector<8x512xi32>
    %c16_i32_29 = arith.constant 16 : i32
    %81 = vector.broadcast %c16_i32_29 : i32 to vector<8x512xi32>
    %82 = arith.cmpi slt, %80, %81 : vector<8x512xi32>
    %83 = arith.andi %78, %82 : vector<8x512xi1>
    %c-1_i32_30 = arith.constant -1 : i32
    %84 = vector.broadcast %c-1_i32_30 : i32 to vector<8x512xi32>
    %85 = arith.addi %7, %84 : vector<8x512xi32>
    %c0_i32_31 = arith.constant 0 : i32
    %86 = vector.broadcast %c0_i32_31 : i32 to vector<8x512xi32>
    %87 = arith.cmpi sge, %85, %86 : vector<8x512xi32>
    %88 = arith.andi %83, %87 : vector<8x512xi1>
    %c-1_i32_32 = arith.constant -1 : i32
    %89 = vector.broadcast %c-1_i32_32 : i32 to vector<8x512xi32>
    %90 = arith.addi %7, %89 : vector<8x512xi32>
    %c16_i32_33 = arith.constant 16 : i32
    %91 = vector.broadcast %c16_i32_33 : i32 to vector<8x512xi32>
    %92 = arith.cmpi slt, %90, %91 : vector<8x512xi32>
    %93 = arith.andi %88, %92 : vector<8x512xi1>
    %cst_34 = arith.constant 0.000000e+00 : f32
    %94 = vector.broadcast %cst_34 : f32 to vector<8x512xf32>
    %95 = arith.select %93, %74, %94 : vector<8x512xi1>, vector<8x512xf32>
    %c0_i32_35 = arith.constant 0 : i32
    %96 = vector.broadcast %c0_i32_35 : i32 to vector<8x512xi32>
    %97 = arith.addi %5, %96 : vector<8x512xi32>
    %c0_i32_36 = arith.constant 0 : i32
    %98 = vector.broadcast %c0_i32_36 : i32 to vector<8x512xi32>
    %99 = arith.cmpi sge, %97, %98 : vector<8x512xi32>
    %c0_i32_37 = arith.constant 0 : i32
    %100 = vector.broadcast %c0_i32_37 : i32 to vector<8x512xi32>
    %101 = arith.addi %5, %100 : vector<8x512xi32>
    %c16_i32_38 = arith.constant 16 : i32
    %102 = vector.broadcast %c16_i32_38 : i32 to vector<8x512xi32>
    %103 = arith.cmpi slt, %101, %102 : vector<8x512xi32>
    %104 = arith.andi %99, %103 : vector<8x512xi1>
    %c0_i32_39 = arith.constant 0 : i32
    %105 = vector.broadcast %c0_i32_39 : i32 to vector<8x512xi32>
    %106 = arith.addi %7, %105 : vector<8x512xi32>
    %c0_i32_40 = arith.constant 0 : i32
    %107 = vector.broadcast %c0_i32_40 : i32 to vector<8x512xi32>
    %108 = arith.cmpi sge, %106, %107 : vector<8x512xi32>
    %109 = arith.andi %104, %108 : vector<8x512xi1>
    %c0_i32_41 = arith.constant 0 : i32
    %110 = vector.broadcast %c0_i32_41 : i32 to vector<8x512xi32>
    %111 = arith.addi %7, %110 : vector<8x512xi32>
    %c16_i32_42 = arith.constant 16 : i32
    %112 = vector.broadcast %c16_i32_42 : i32 to vector<8x512xi32>
    %113 = arith.cmpi slt, %111, %112 : vector<8x512xi32>
    %114 = arith.andi %109, %113 : vector<8x512xi1>
    %cst_43 = arith.constant 0.000000e+00 : f32
    %115 = vector.broadcast %cst_43 : f32 to vector<8x512xf32>
    %116 = arith.select %114, %0, %115 : vector<8x512xi1>, vector<8x512xf32>
    %c511_i32 = arith.constant 511 : i32
    %117 = tpu.dynamic_rotate %0 by %c511_i32 dim 1 : vector<8x512xf32>, i32 -> vector<8x512xf32>
    %c0_i32_44 = arith.constant 0 : i32
    %118 = vector.broadcast %c0_i32_44 : i32 to vector<8x512xi32>
    %119 = arith.addi %5, %118 : vector<8x512xi32>
    %c0_i32_45 = arith.constant 0 : i32
    %120 = vector.broadcast %c0_i32_45 : i32 to vector<8x512xi32>
    %121 = arith.cmpi sge, %119, %120 : vector<8x512xi32>
    %c0_i32_46 = arith.constant 0 : i32
    %122 = vector.broadcast %c0_i32_46 : i32 to vector<8x512xi32>
    %123 = arith.addi %5, %122 : vector<8x512xi32>
    %c16_i32_47 = arith.constant 16 : i32
    %124 = vector.broadcast %c16_i32_47 : i32 to vector<8x512xi32>
    %125 = arith.cmpi slt, %123, %124 : vector<8x512xi32>
    %126 = arith.andi %121, %125 : vector<8x512xi1>
    %c1_i32_48 = arith.constant 1 : i32
    %127 = vector.broadcast %c1_i32_48 : i32 to vector<8x512xi32>
    %128 = arith.addi %7, %127 : vector<8x512xi32>
    %c0_i32_49 = arith.constant 0 : i32
    %129 = vector.broadcast %c0_i32_49 : i32 to vector<8x512xi32>
    %130 = arith.cmpi sge, %128, %129 : vector<8x512xi32>
    %131 = arith.andi %126, %130 : vector<8x512xi1>
    %c1_i32_50 = arith.constant 1 : i32
    %132 = vector.broadcast %c1_i32_50 : i32 to vector<8x512xi32>
    %133 = arith.addi %7, %132 : vector<8x512xi32>
    %c16_i32_51 = arith.constant 16 : i32
    %134 = vector.broadcast %c16_i32_51 : i32 to vector<8x512xi32>
    %135 = arith.cmpi slt, %133, %134 : vector<8x512xi32>
    %136 = arith.andi %131, %135 : vector<8x512xi1>
    %cst_52 = arith.constant 0.000000e+00 : f32
    %137 = vector.broadcast %cst_52 : f32 to vector<8x512xf32>
    %138 = arith.select %136, %117, %137 : vector<8x512xi1>, vector<8x512xf32>
    %c497_i32 = arith.constant 497 : i32
    %139 = tpu.dynamic_rotate %0 by %c497_i32 dim 1 : vector<8x512xf32>, i32 -> vector<8x512xf32>
    %c1_i32_53 = arith.constant 1 : i32
    %140 = vector.broadcast %c1_i32_53 : i32 to vector<8x512xi32>
    %141 = arith.addi %5, %140 : vector<8x512xi32>
    %c0_i32_54 = arith.constant 0 : i32
    %142 = vector.broadcast %c0_i32_54 : i32 to vector<8x512xi32>
    %143 = arith.cmpi sge, %141, %142 : vector<8x512xi32>
    %c1_i32_55 = arith.constant 1 : i32
    %144 = vector.broadcast %c1_i32_55 : i32 to vector<8x512xi32>
    %145 = arith.addi %5, %144 : vector<8x512xi32>
    %c16_i32_56 = arith.constant 16 : i32
    %146 = vector.broadcast %c16_i32_56 : i32 to vector<8x512xi32>
    %147 = arith.cmpi slt, %145, %146 : vector<8x512xi32>
    %148 = arith.andi %143, %147 : vector<8x512xi1>
    %c-1_i32_57 = arith.constant -1 : i32
    %149 = vector.broadcast %c-1_i32_57 : i32 to vector<8x512xi32>
    %150 = arith.addi %7, %149 : vector<8x512xi32>
    %c0_i32_58 = arith.constant 0 : i32
    %151 = vector.broadcast %c0_i32_58 : i32 to vector<8x512xi32>
    %152 = arith.cmpi sge, %150, %151 : vector<8x512xi32>
    %153 = arith.andi %148, %152 : vector<8x512xi1>
    %c-1_i32_59 = arith.constant -1 : i32
    %154 = vector.broadcast %c-1_i32_59 : i32 to vector<8x512xi32>
    %155 = arith.addi %7, %154 : vector<8x512xi32>
    %c16_i32_60 = arith.constant 16 : i32
    %156 = vector.broadcast %c16_i32_60 : i32 to vector<8x512xi32>
    %157 = arith.cmpi slt, %155, %156 : vector<8x512xi32>
    %158 = arith.andi %153, %157 : vector<8x512xi1>
    %cst_61 = arith.constant 0.000000e+00 : f32
    %159 = vector.broadcast %cst_61 : f32 to vector<8x512xf32>
    %160 = arith.select %158, %139, %159 : vector<8x512xi1>, vector<8x512xf32>
    %c496_i32 = arith.constant 496 : i32
    %161 = tpu.dynamic_rotate %0 by %c496_i32 dim 1 : vector<8x512xf32>, i32 -> vector<8x512xf32>
    %c1_i32_62 = arith.constant 1 : i32
    %162 = vector.broadcast %c1_i32_62 : i32 to vector<8x512xi32>
    %163 = arith.addi %5, %162 : vector<8x512xi32>
    %c0_i32_63 = arith.constant 0 : i32
    %164 = vector.broadcast %c0_i32_63 : i32 to vector<8x512xi32>
    %165 = arith.cmpi sge, %163, %164 : vector<8x512xi32>
    %c1_i32_64 = arith.constant 1 : i32
    %166 = vector.broadcast %c1_i32_64 : i32 to vector<8x512xi32>
    %167 = arith.addi %5, %166 : vector<8x512xi32>
    %c16_i32_65 = arith.constant 16 : i32
    %168 = vector.broadcast %c16_i32_65 : i32 to vector<8x512xi32>
    %169 = arith.cmpi slt, %167, %168 : vector<8x512xi32>
    %170 = arith.andi %165, %169 : vector<8x512xi1>
    %c0_i32_66 = arith.constant 0 : i32
    %171 = vector.broadcast %c0_i32_66 : i32 to vector<8x512xi32>
    %172 = arith.addi %7, %171 : vector<8x512xi32>
    %c0_i32_67 = arith.constant 0 : i32
    %173 = vector.broadcast %c0_i32_67 : i32 to vector<8x512xi32>
    %174 = arith.cmpi sge, %172, %173 : vector<8x512xi32>
    %175 = arith.andi %170, %174 : vector<8x512xi1>
    %c0_i32_68 = arith.constant 0 : i32
    %176 = vector.broadcast %c0_i32_68 : i32 to vector<8x512xi32>
    %177 = arith.addi %7, %176 : vector<8x512xi32>
    %c16_i32_69 = arith.constant 16 : i32
    %178 = vector.broadcast %c16_i32_69 : i32 to vector<8x512xi32>
    %179 = arith.cmpi slt, %177, %178 : vector<8x512xi32>
    %180 = arith.andi %175, %179 : vector<8x512xi1>
    %cst_70 = arith.constant 0.000000e+00 : f32
    %181 = vector.broadcast %cst_70 : f32 to vector<8x512xf32>
    %182 = arith.select %180, %161, %181 : vector<8x512xi1>, vector<8x512xf32>
    %c495_i32 = arith.constant 495 : i32
    %183 = tpu.dynamic_rotate %0 by %c495_i32 dim 1 : vector<8x512xf32>, i32 -> vector<8x512xf32>
    %c1_i32_71 = arith.constant 1 : i32
    %184 = vector.broadcast %c1_i32_71 : i32 to vector<8x512xi32>
    %185 = arith.addi %5, %184 : vector<8x512xi32>
    %c0_i32_72 = arith.constant 0 : i32
    %186 = vector.broadcast %c0_i32_72 : i32 to vector<8x512xi32>
    %187 = arith.cmpi sge, %185, %186 : vector<8x512xi32>
    %c1_i32_73 = arith.constant 1 : i32
    %188 = vector.broadcast %c1_i32_73 : i32 to vector<8x512xi32>
    %189 = arith.addi %5, %188 : vector<8x512xi32>
    %c16_i32_74 = arith.constant 16 : i32
    %190 = vector.broadcast %c16_i32_74 : i32 to vector<8x512xi32>
    %191 = arith.cmpi slt, %189, %190 : vector<8x512xi32>
    %192 = arith.andi %187, %191 : vector<8x512xi1>
    %c1_i32_75 = arith.constant 1 : i32
    %193 = vector.broadcast %c1_i32_75 : i32 to vector<8x512xi32>
    %194 = arith.addi %7, %193 : vector<8x512xi32>
    %c0_i32_76 = arith.constant 0 : i32
    %195 = vector.broadcast %c0_i32_76 : i32 to vector<8x512xi32>
    %196 = arith.cmpi sge, %194, %195 : vector<8x512xi32>
    %197 = arith.andi %192, %196 : vector<8x512xi1>
    %c1_i32_77 = arith.constant 1 : i32
    %198 = vector.broadcast %c1_i32_77 : i32 to vector<8x512xi32>
    %199 = arith.addi %7, %198 : vector<8x512xi32>
    %c16_i32_78 = arith.constant 16 : i32
    %200 = vector.broadcast %c16_i32_78 : i32 to vector<8x512xi32>
    %201 = arith.cmpi slt, %199, %200 : vector<8x512xi32>
    %202 = arith.andi %197, %201 : vector<8x512xi1>
    %cst_79 = arith.constant 0.000000e+00 : f32
    %203 = vector.broadcast %cst_79 : f32 to vector<8x512xf32>
    %204 = arith.select %202, %183, %203 : vector<8x512xi1>, vector<8x512xf32>
    %205 = tpu.concatenate %29, %51, %73, %95, %116, %138, %160, %182, %204 in 0 : vector<8x512xf32>, vector<8x512xf32>, vector<8x512xf32>, vector<8x512xf32>, vector<8x512xf32>, vector<8x512xf32>, vector<8x512xf32>, vector<8x512xf32>, vector<8x512xf32> -> vector<72x512xf32>
    %c0_80 = arith.constant 0 : index
    %c0_81 = arith.constant 0 : index
    %206 = vector.load %arg1[%c0_80, %c0_81] : memref<8x72xf32, #tpu.memory_space<vmem>>, vector<8x72xf32>
    %cst_82 = arith.constant dense<0.000000e+00> : vector<8x512xf32>
    %207 = tpu.matmul %206, %205, %cst_82 {dimension_numbers = #tpu.dot_dimension_numbers<[1], [0], [0], [1], [0, 0, 1, 1], [], []>, precision = #tpu.contract_precision<fp32>} : vector<8x72xf32>, vector<72x512xf32>, vector<8x512xf32> -> vector<8x512xf32>
    %c0_83 = arith.constant 0 : index
    %c0_84 = arith.constant 0 : index
    %208 = vector.load %arg2[%c0_83, %c0_84] : memref<8x1xf32, #tpu.memory_space<vmem>>, vector<8x1xf32>
    %209 = vector.broadcast %208 : vector<8x1xf32> to vector<8x512xf32>
    %210 = arith.addf %207, %209 : vector<8x512xf32>
    %cst_85 = arith.constant 0.000000e+00 : f32
    %211 = vector.broadcast %cst_85 : f32 to vector<8x512xf32>
    %212 = arith.maximumf %210, %211 : vector<8x512xf32>
    %c0_86 = arith.constant 0 : index
    %c0_87 = arith.constant 0 : index
    %213 = vector.load %arg3[%c0_86, %c0_87] : memref<8x10xf32, #tpu.memory_space<vmem>>, vector<8x10xf32>
    %214 = vector.extract_strided_slice %212 {offsets = [0, 0], sizes = [8, 256], strides = [1, 1]} : vector<8x512xf32> to vector<8x256xf32>
    %cst_88 = arith.constant dense<0.000000e+00> : vector<8xf32>
    %215 = vector.multi_reduction <add>, %214, %cst_88 [1] : vector<8x256xf32> to vector<8xf32>
    %216 = vector.shape_cast %215 : vector<8xf32> to vector<8x1xf32>
    %217 = vector.broadcast %216 : vector<8x1xf32> to vector<8x10xf32>
    %218 = arith.mulf %217, %213 : vector<8x10xf32>
    %cst_89 = arith.constant dense<0.000000e+00> : vector<10xf32>
    %219 = vector.multi_reduction <add>, %218, %cst_89 [0] : vector<8x10xf32> to vector<10xf32>
    %220 = vector.shape_cast %219 : vector<10xf32> to vector<1x10xf32>
    %221 = vector.extract_strided_slice %212 {offsets = [0, 256], sizes = [8, 256], strides = [1, 1]} : vector<8x512xf32> to vector<8x256xf32>
    %cst_90 = arith.constant dense<0.000000e+00> : vector<8xf32>
    %222 = vector.multi_reduction <add>, %221, %cst_90 [1] : vector<8x256xf32> to vector<8xf32>
    %223 = vector.shape_cast %222 : vector<8xf32> to vector<8x1xf32>
    %224 = vector.broadcast %223 : vector<8x1xf32> to vector<8x10xf32>
    %225 = arith.mulf %224, %213 : vector<8x10xf32>
    %cst_91 = arith.constant dense<0.000000e+00> : vector<10xf32>
    %226 = vector.multi_reduction <add>, %225, %cst_91 [0] : vector<8x10xf32> to vector<10xf32>
    %227 = vector.shape_cast %226 : vector<10xf32> to vector<1x10xf32>
    %228 = tpu.concatenate %220, %227 in 0 : vector<1x10xf32>, vector<1x10xf32> -> vector<2x10xf32>
    %c0_92 = arith.constant 0 : index
    %c0_93 = arith.constant 0 : index
    %229 = vector.load %arg4[%c0_92, %c0_93] : memref<1x10xf32, #tpu.memory_space<vmem>>, vector<1x10xf32>
    %230 = vector.broadcast %229 : vector<1x10xf32> to vector<2x10xf32>
    %231 = arith.addf %228, %230 : vector<2x10xf32>
    %c0_94 = arith.constant 0 : index
    %c0_95 = arith.constant 0 : index
    %232 = vector.load %arg5[%c0_94, %c0_95] : memref<2x10xf32, #tpu.memory_space<vmem>>, vector<2x10xf32>
    tpu.vector_store %arg5[%c0_94, %c0_95], %231 {strides = array<i32>} : memref<2x10xf32, #tpu.memory_space<vmem>>, vector<2x10xf32>,
    return
  }
}

</mosaic_0001>

<llo_original>
// kernel: ignite_forward.1
$region0: #{ignite_forward.1}
  #allocation0 [shape = 'u32[]', space=smem, size = 0x4, offset = 0x4, fixed_abs, tag = 'smem constant byte address 0x4 - core index']
  #allocation1 [shape = 'u32[72,128]{1,0:T(1,128)}', space=vmem, size = 0x9000, scoped, tag = 'internal scratch']
  %s0 = inlined_call_operand.vmem [shape: f32[8,512], index: 0, kind: input, shape index: {}]
  %s1 = inlined_call_operand.vmem [shape: f32[8,72], index: 1, kind: input, shape index: {}]
  %s2 = inlined_call_operand.vmem [shape: f32[8,1], index: 2, kind: input, shape index: {}]
  %s3 = inlined_call_operand.vmem [shape: f32[8,10], index: 3, kind: input, shape index: {}]
  %s4 = inlined_call_operand.vmem [shape: f32[1,10], index: 4, kind: input, shape index: {}]
  %s5 = inlined_call_operand.hbm [shape: f32[2,10], index: 5, kind: output, shape index: {}]
  %s6 = sld [smem:[#allocation0]]
  $region30: #{ignite_forward.1} parent=0
    _
  %s8 = ssub.s32 1, %s6
  %s9 = scalar_select 0, %s8, %s6
  $region1: #{ignite_forward.1} parent=0
    #allocation2 [shape = 'u8[1024]{0}', space=vmem, size = 0x400, scoped, tag = 'output window, operand 0, single buffered']
    #allocation3 [shape = 's32[1]{0}', space=sflag, size = 0x4, scoped, tag = 'scoped memory for ignite_forward.1']
    %10 = vsyncpa [#allocation3], 0
    // Predicated region
    $region2: #{ignite_forward.1} parent=1 // pred_check
      _
    $region3: #{ignite_forward.1} parent=1 // pred_check_branch
      %12 = sbr.rel (0) target = $region5
    $region4: #{ignite_forward.1} parent=1 // pred_region
      _
    $region5: #{ignite_forward.1} parent=1 // pred_fallthru
      _
    // Predicated region
    $region6: #{ignite_forward.1} parent=1 // pred_check
      _
    $region7: #{ignite_forward.1} parent=1 // pred_check_branch
      %14 = sbr.rel (0) target = $region9
    $region8: #{ignite_forward.1} parent=1 // pred_region
      _
    $region9: #{ignite_forward.1} parent=1 // pred_fallthru
      _
    // Predicated region
    $region10: #{ignite_forward.1} parent=1 // pred_check
      _
    $region11: #{ignite_forward.1} parent=1 // pred_check_branch
      %16 = sbr.rel (0) target = $region13
    $region12: #{ignite_forward.1} parent=1 // pred_region
      _
    $region13: #{ignite_forward.1} parent=1 // pred_fallthru
      _
    // Predicated region
    $region14: #{ignite_forward.1} parent=1 // pred_check
      _
    $region15: #{ignite_forward.1} parent=1 // pred_check_branch
      %18 = sbr.rel (0) target = $region17
    $region16: #{ignite_forward.1} parent=1 // pred_region
      _
    $region17: #{ignite_forward.1} parent=1 // pred_fallthru
      _
    // Predicated region
    $region18: #{ignite_forward.1} parent=1 // pred_check
      _
    $region19: #{ignite_forward.1} parent=1 // pred_check_branch
      %20 = sbr.rel (0) target = $region21
    $region20: #{ignite_forward.1} parent=1 // pred_region
      _
    $region21: #{ignite_forward.1} parent=1 // pred_fallthru
      _
    %v21 = vld [vmem:[%s0] sm:$0xff]
    %v22 = vld [vmem:[%s0 + $0x8] sm:$0xff]
    %v23 = vld [vmem:[%s0 + $0x10] sm:$0xff]
    %v24 = vld [vmem:[%s0 + $0x18] sm:$0xff]
    %v25 = vlaneseq
    %v26 = vand.u32 %v25, 127
    %v27 = vadd.s32 %v26, 128
    %v28 = vadd.s32 %v26, 256
    %v29 = vadd.s32 %v26, 384
    %v30 = vand.u32 %v26, 255
    %v31 = vand.u32 %v27, 255
    %v32 = vand.u32 %v28, 255
    %v33 = vand.u32 %v29, 255
    %v34 = vshra.s32 %v30, 4
    %v35 = vshra.s32 %v31, 4
    %v36 = vshra.s32 %v32, 4
    %v37 = vshra.s32 %v33, 4
    %v38 = vand.u32 %v30, 15
    %v39 = vand.u32 %v31, 15
    %v40 = vand.u32 %v32, 15
    %v41 = vand.u32 %v33, 15
    %42 = vrot.lane.b32.xlu0 %v21, 17
    %v43 = vpop.permute.xlu0 %42
    %44 = vrot.lane.b32.xlu0 %v22, 17
    %v45 = vpop.permute.xlu0 %44
    %46 = vrot.lane.b32.xlu0 %v23, 17
    %v47 = vpop.permute.xlu0 %46
    %48 = vrot.lane.b32.xlu0 %v24, 17
    %v49 = vpop.permute.xlu0 %48
    %vm50 = vcmp.lt.s32.totalorder %v26, 17
    %v51 = vsel %vm50, %v47, %v49
    %v52 = vsel %vm50, %v45, %v47
    %v53 = vsel %vm50, %v43, %v45
    %v54 = vsel %vm50, %v49, %v43
    %v55 = vadd.s32 %v34, 4294967295
    %v56 = vadd.s32 %v35, 4294967295
    %v57 = vadd.s32 %v36, 4294967295
    %v58 = vadd.s32 %v37, 4294967295
    %vm59 = vcmp.ge.s32.totalorder %v55, 0
    %vm60 = vcmp.ge.s32.totalorder %v56, 0
    %vm61 = vcmp.ge.s32.totalorder %v57, 0
    %vm62 = vcmp.ge.s32.totalorder %v58, 0
    %vm63 = vcmp.lt.s32.totalorder %v55, 16
    %vm64 = vcmp.lt.s32.totalorder %v56, 16
    %vm65 = vcmp.lt.s32.totalorder %v57, 16
    %vm66 = vcmp.lt.s32.totalorder %v58, 16
    %vm67 = vmand %vm59, %vm63
    %vm68 = vmand %vm60, %vm64
    %vm69 = vmand %vm61, %vm65
    %vm70 = vmand %vm62, %vm66
    %v71 = vadd.s32 %v38, 4294967295
    %v72 = vadd.s32 %v39, 4294967295
    %v73 = vadd.s32 %v40, 4294967295
    %v74 = vadd.s32 %v41, 4294967295
    %vm75 = vcmp.ge.s32.totalorder %v71, 0
    %vm76 = vcmp.ge.s32.totalorder %v72, 0
    %vm77 = vcmp.ge.s32.totalorder %v73, 0
    %vm78 = vcmp.ge.s32.totalorder %v74, 0
    %vm79 = vmand %vm67, %vm75
    %vm80 = vmand %vm68, %vm76
    %vm81 = vmand %vm69, %vm77
    %vm82 = vmand %vm70, %vm78
    %vm83 = vcmp.lt.s32.totalorder %v71, 16
    %vm84 = vcmp.lt.s32.totalorder %v72, 16
    %vm85 = vcmp.lt.s32.totalorder %v73, 16
    %vm86 = vcmp.lt.s32.totalorder %v74, 16
    %vm87 = vmand %vm79, %vm83
    %vm88 = vmand %vm80, %vm84
    %vm89 = vmand %vm81, %vm85
    %vm90 = vmand %vm82, %vm86
    %v91 = vsel %vm87, %v54, 0.0
    %v92 = vsel %vm88, %v53, 0.0
    %v93 = vsel %vm89, %v52, 0.0
    %v94 = vsel %vm90, %v51, 0.0
    %95 = vrot.lane.b32.xlu0 %v21, 16
    %v96 = vpop.permute.xlu0 %95
    %97 = vrot.lane.b32.xlu0 %v22, 16
    %v98 = vpop.permute.xlu0 %97
    %99 = vrot.lane.b32.xlu0 %v23, 16
    %v100 = vpop.permute.xlu0 %99
    %101 = vrot.lane.b32.xlu0 %v24, 16
    %v102 = vpop.permute.xlu0 %101
    %vm103 = vcmp.lt.s32.totalorder %v26, 16
    %v104 = vsel %vm103, %v100, %v102
    %v105 = vsel %vm103, %v98, %v100
    %v106 = vsel %vm103, %v96, %v98
    %v107 = vsel %vm103, %v102, %v96
    %vm108 = vcmp.ge.s32.totalorder %v38, 0
    %vm109 = vcmp.ge.s32.totalorder %v39, 0
    %vm110 = vcmp.ge.s32.totalorder %v40, 0
    %vm111 = vcmp.ge.s32.totalorder %v41, 0
    %vm112 = vmand %vm67, %vm108
    %vm113 = vmand %vm68, %vm109
    %vm114 = vmand %vm69, %vm110
    %vm115 = vmand %vm70, %vm111
    %vm116 = vcmp.lt.s32.totalorder %v38, 16
    %vm117 = vcmp.lt.s32.totalorder %v39, 16
    %vm118 = vcmp.lt.s32.totalorder %v40, 16
    %vm119 = vcmp.lt.s32.totalorder %v41, 16
    %vm120 = vmand %vm112, %vm116
    %vm121 = vmand %vm113, %vm117
    %vm122 = vmand %vm114, %vm118
    %vm123 = vmand %vm115, %vm119
    %v124 = vsel %vm120, %v107, 0.0
    %v125 = vsel %vm121, %v106, 0.0
    %v126 = vsel %vm122, %v105, 0.0
    %v127 = vsel %vm123, %v104, 0.0
    %128 = vrot.lane.b32.xlu0 %v21, 15
    %v129 = vpop.permute.xlu0 %128
    %130 = vrot.lane.b32.xlu0 %v22, 15
    %v131 = vpop.permute.xlu0 %130
    %132 = vrot.lane.b32.xlu0 %v23, 15
    %v133 = vpop.permute.xlu0 %132
    %134 = vrot.lane.b32.xlu0 %v24, 15
    %v135 = vpop.permute.xlu0 %134
    %vm136 = vcmp.lt.s32.totalorder %v26, 15
    %v137 = vsel %vm136, %v133, %v135
    %v138 = vsel %vm136, %v131, %v133
    %v139 = vsel %vm136, %v129, %v131
    %v140 = vsel %vm136, %v135, %v129
    %v141 = vadd.s32 %v38, 1
    %v142 = vadd.s32 %v39, 1
    %v143 = vadd.s32 %v40, 1
    %v144 = vadd.s32 %v41, 1
    %vm145 = vcmp.ge.s32.totalorder %v141, 0
    %vm146 = vcmp.ge.s32.totalorder %v142, 0
    %vm147 = vcmp.ge.s32.totalorder %v143, 0
    %vm148 = vcmp.ge.s32.totalorder %v144, 0
    %vm149 = vmand %vm67, %vm145
    %vm150 = vmand %vm68, %vm146
    %vm151 = vmand %vm69, %vm147
    %vm152 = vmand %vm70, %vm148
    %vm153 = vcmp.lt.s32.totalorder %v141, 16
    %vm154 = vcmp.lt.s32.totalorder %v142, 16
    %vm155 = vcmp.lt.s32.totalorder %v143, 16
    %vm156 = vcmp.lt.s32.totalorder %v144, 16
    %vm157 = vmand %vm149, %vm153
    %vm158 = vmand %vm150, %vm154
    %vm159 = vmand %vm151, %vm155
    %vm160 = vmand %vm152, %vm156
    %v161 = vsel %vm157, %v140, 0.0
    %v162 = vsel %vm158, %v139, 0.0
    %v163 = vsel %vm159, %v138, 0.0
    %v164 = vsel %vm160, %v137, 0.0
    %165 = vrot.lane.b32.xlu0 %v21, 1
    %v166 = vpop.permute.xlu0 %165
    %167 = vrot.lane.b32.xlu0 %v22, 1
    %v168 = vpop.permute.xlu0 %167
    %169 = vrot.lane.b32.xlu0 %v23, 1
    %v170 = vpop.permute.xlu0 %169
    %171 = vrot.lane.b32.xlu0 %v24, 1
    %v172 = vpop.permute.xlu0 %171
    %vm173 = vcmp.lt.s32.totalorder %v26, 1
    %v174 = vsel %vm173, %v170, %v172
    %v175 = vsel %vm173, %v168, %v170
    %v176 = vsel %vm173, %v166, %v168
    %v177 = vsel %vm173, %v172, %v166
    %vm178 = vcmp.ge.s32.totalorder %v34, 0
    %vm179 = vcmp.ge.s32.totalorder %v35, 0
    %vm180 = vcmp.ge.s32.totalorder %v36, 0
    %vm181 = vcmp.ge.s32.totalorder %v37, 0
    %vm182 = vcmp.lt.s32.totalorder %v34, 16
    %vm183 = vcmp.lt.s32.totalorder %v35, 16
    %vm184 = vcmp.lt.s32.totalorder %v36, 16
    %vm185 = vcmp.lt.s32.totalorder %v37, 16
    %vm186 = vmand %vm178, %vm182
    %vm187 = vmand %vm179, %vm183
    %vm188 = vmand %vm180, %vm184
    %vm189 = vmand %vm181, %vm185
    %vm190 = vmand %vm186, %vm75
    %vm191 = vmand %vm187, %vm76
    %vm192 = vmand %vm188, %vm77
    %vm193 = vmand %vm189, %vm78
    %vm194 = vmand %vm190, %vm83
    %vm195 = vmand %vm191, %vm84
    %vm196 = vmand %vm192, %vm85
    %vm197 = vmand %vm193, %vm86
    %v198 = vsel %vm194, %v177, 0.0
    %v199 = vsel %vm195, %v176, 0.0
    %v200 = vsel %vm196, %v175, 0.0
    %v201 = vsel %vm197, %v174, 0.0
    %vm202 = vmand %vm186, %vm108
    %vm203 = vmand %vm187, %vm109
    %vm204 = vmand %vm188, %vm110
    %vm205 = vmand %vm189, %vm111
    %vm206 = vmand %vm202, %vm116
    %vm207 = vmand %vm203, %vm117
    %vm208 = vmand %vm204, %vm118
    %vm209 = vmand %vm205, %vm119
    %v210 = vsel %vm206, %v21, 0.0
    %v211 = vsel %vm207, %v22, 0.0
    %v212 = vsel %vm208, %v23, 0.0
    %v213 = vsel %vm209, %v24, 0.0
    %214 = vrot.lane.b32.xlu0 %v21, 127
    %v215 = vpop.permute.xlu0 %214
    %216 = vrot.lane.b32.xlu0 %v22, 127
    %v217 = vpop.permute.xlu0 %216
    %218 = vrot.lane.b32.xlu0 %v23, 127
    %v219 = vpop.permute.xlu0 %218
    %220 = vrot.lane.b32.xlu0 %v24, 127
    %v221 = vpop.permute.xlu0 %220
    %vm222 = vcmp.lt.s32.totalorder %v26, 127
    %v223 = vsel %vm222, %v219, %v221
    %v224 = vsel %vm222, %v217, %v219
    %v225 = vsel %vm222, %v215, %v217
    %v226 = vsel %vm222, %v221, %v215
    %vm227 = vmand %vm186, %vm145
    %vm228 = vmand %vm187, %vm146
    %vm229 = vmand %vm188, %vm147
    %vm230 = vmand %vm189, %vm148
    %vm231 = vmand %vm227, %vm153
    %vm232 = vmand %vm228, %vm154
    %vm233 = vmand %vm229, %vm155
    %vm234 = vmand %vm230, %vm156
    %v235 = vsel %vm231, %v225, 0.0
    %v236 = vsel %vm232, %v224, 0.0
    %v237 = vsel %vm233, %v223, 0.0
    %v238 = vsel %vm234, %v226, 0.0
    %239 = vrot.lane.b32.xlu0 %v21, 113
    %v240 = vpop.permute.xlu0 %239
    %241 = vrot.lane.b32.xlu0 %v22, 113
    %v242 = vpop.permute.xlu0 %241
    %243 = vrot.lane.b32.xlu0 %v23, 113
    %v244 = vpop.permute.xlu0 %243
    %245 = vrot.lane.b32.xlu0 %v24, 113
    %v246 = vpop.permute.xlu0 %245
    %vm247 = vcmp.lt.s32.totalorder %v26, 113
    %v248 = vsel %vm247, %v244, %v246
    %v249 = vsel %vm247, %v242, %v244
    %v250 = vsel %vm247, %v240, %v242
    %v251 = vsel %vm247, %v246, %v240
    %v252 = vadd.s32 %v34, 1
    %v253 = vadd.s32 %v35, 1
    %v254 = vadd.s32 %v36, 1
    %v255 = vadd.s32 %v37, 1
    %vm256 = vcmp.ge.s32.totalorder %v252, 0
    %vm257 = vcmp.ge.s32.totalorder %v253, 0
    %vm258 = vcmp.ge.s32.totalorder %v254, 0
    %vm259 = vcmp.ge.s32.totalorder %v255, 0
    %vm260 = vcmp.lt.s32.totalorder %v252, 16
    %vm261 = vcmp.lt.s32.totalorder %v253, 16
    %vm262 = vcmp.lt.s32.totalorder %v254, 16
    %vm263 = vcmp.lt.s32.totalorder %v255, 16
    %vm264 = vmand %vm256, %vm260
    %vm265 = vmand %vm257, %vm261
    %vm266 = vmand %vm258, %vm262
    %vm267 = vmand %vm259, %vm263
    %vm268 = vmand %vm264, %vm75
    %vm269 = vmand %vm265, %vm76
    %vm270 = vmand %vm266, %vm77
    %vm271 = vmand %vm267, %vm78
    %vm272 = vmand %vm268, %vm83
    %vm273 = vmand %vm269, %vm84
    %vm274 = vmand %vm270, %vm85
    %vm275 = vmand %vm271, %vm86
    %v276 = vsel %vm272, %v250, 0.0
    %v277 = vsel %vm273, %v249, 0.0
    %v278 = vsel %vm274, %v248, 0.0
    %v279 = vsel %vm275, %v251, 0.0
    %280 = vrot.lane.b32.xlu0 %v21, 112
    %v281 = vpop.permute.xlu0 %280
    %282 = vrot.lane.b32.xlu0 %v22, 112
    %v283 = vpop.permute.xlu0 %282
    %284 = vrot.lane.b32.xlu0 %v23, 112
    %v285 = vpop.permute.xlu0 %284
    %286 = vrot.lane.b32.xlu0 %v24, 112
    %v287 = vpop.permute.xlu0 %286
    %vm288 = vcmp.lt.s32.totalorder %v26, 112
    %v289 = vsel %vm288, %v285, %v287
    %v290 = vsel %vm288, %v283, %v285
    %v291 = vsel %vm288, %v281, %v283
    %v292 = vsel %vm288, %v287, %v281
    %vm293 = vmand %vm264, %vm108
    %vm294 = vmand %vm265, %vm109
    %vm295 = vmand %vm266, %vm110
    %vm296 = vmand %vm267, %vm111
    %vm297 = vmand %vm293, %vm116
    %vm298 = vmand %vm294, %vm117
    %vm299 = vmand %vm295, %vm118
    %vm300 = vmand %vm296, %vm119
    %v301 = vsel %vm297, %v291, 0.0
    %v302 = vsel %vm298, %v290, 0.0
    %v303 = vsel %vm299, %v289, 0.0
    %v304 = vsel %vm300, %v292, 0.0
    %305 = vrot.lane.b32.xlu0 %v21, 111
    %v306 = vpop.permute.xlu0 %305
    %307 = vrot.lane.b32.xlu0 %v22, 111
    %v308 = vpop.permute.xlu0 %307
    %309 = vrot.lane.b32.xlu0 %v23, 111
    %v310 = vpop.permute.xlu0 %309
    %311 = vrot.lane.b32.xlu0 %v24, 111
    %v312 = vpop.permute.xlu0 %311
    %vm313 = vcmp.lt.s32.totalorder %v26, 111
    %v314 = vsel %vm313, %v310, %v312
    %v315 = vsel %vm313, %v308, %v310
    %v316 = vsel %vm313, %v306, %v308
    %v317 = vsel %vm313, %v312, %v306
    %vm318 = vmand %vm264, %vm145
    %vm319 = vmand %vm265, %vm146
    %vm320 = vmand %vm266, %vm147
    %vm321 = vmand %vm267, %vm148
    %vm322 = vmand %vm318, %vm153
    %vm323 = vmand %vm319, %vm154
    %vm324 = vmand %vm320, %vm155
    %vm325 = vmand %vm321, %vm156
    %v326 = vsel %vm322, %v316, 0.0
    %v327 = vsel %vm323, %v315, 0.0
    %v328 = vsel %vm324, %v314, 0.0
    %v329 = vsel %vm325, %v317, 0.0
    %v330 = vld [vmem:[%s1] sm:$0xff]
    %v331 = vld [vmem:[%s2] sm:$0xff]
    %333 = vset.pattern.permute.xlu0 0
    %334 = vperm.xlu0 %333, %v331
    %v335 = vpop.permute.xlu0 %334
    %vm337 = vcmask 588800
    %v339 = vsel %vm337, %v330, 0
    %341 = vmatpush.msra.mxu0 0.0
    %342 = vmatpush.msra.mxu0 0.0
    %343 = vmatpush.msra.mxu0 0.0
    %344 = vmatpush.msra.mxu0 0.0
    %345 = vmatpush.msra.mxu0 0.0
    %346 = vmatpush.msra.mxu0 0.0
    %347 = vmatpush.msra.mxu0 0.0
    %v348 = vand.u32 %v326, 4294901760
    %349 = vmatpush.msra.mxu0 %v348
    %v350 = vand.u32 %v301, 4294901760
    %351 = vmatpush.msra.mxu0 %v350
    %v352 = vand.u32 %v276, 4294901760
    %353 = vmatpush.msra.mxu0 %v352
    %v354 = vand.u32 %v235, 4294901760
    %355 = vmatpush.msra.mxu0 %v354
    %v356 = vand.u32 %v210, 4294901760
    %357 = vmatpush.msra.mxu0 %v356
    %v358 = vand.u32 %v198, 4294901760
    %359 = vmatpush.msra.mxu0 %v358
    %v360 = vand.u32 %v161, 4294901760
    %361 = vmatpush.msra.mxu0 %v360
    %v362 = vand.u32 %v124, 4294901760
    %363 = vmatpush.msra.mxu0 %v362
    %v364 = vand.u32 %v91, 4294901760
    %365 = vmatpush.msra.mxu0 %v364
    %v366 = vand.u32 %v339, 4294901760
    %v367 = vsub.f32 %v339, %v366
    %v368 = vand.u32 %v367, 4294901760
    %v369 = vsub.f32 %v367, %v368
    %v370 = vand.u32 %v369, 4294901760
    %371 = vmatmul.f32.gmra.mxu0 %v370
    %v372 = vpop.f32.mrf.mxu0
    %v373 = vadd.f32 %v335, %v372
    %374 = vdwg.mxu0
    %375 = vmatpush.msra.mxu0 0.0
    %376 = vmatpush.msra.mxu0 0.0
    %377 = vmatpush.msra.mxu0 0.0
    %378 = vmatpush.msra.mxu0 0.0
    %379 = vmatpush.msra.mxu0 0.0
    %380 = vmatpush.msra.mxu0 0.0
    %381 = vmatpush.msra.mxu0 0.0
    %v382 = vand.u32 %v326, 4294901760
    %v383 = vsub.f32 %v326, %v382
    %v384 = vand.u32 %v383, 4294901760
    %v385 = vsub.f32 %v383, %v384
    %v386 = vand.u32 %v385, 4294901760
    %387 = vmatpush.msra.mxu0 %v386
    %v388 = vand.u32 %v301, 4294901760
    %v389 = vsub.f32 %v301, %v388
    %v390 = vand.u32 %v389, 4294901760
    %v391 = vsub.f32 %v389, %v390
    %v392 = vand.u32 %v391, 4294901760
    %393 = vmatpush.msra.mxu0 %v392
    %v394 = vand.u32 %v276, 4294901760
    %v395 = vsub.f32 %v276, %v394
    %v396 = vand.u32 %v395, 4294901760
    %v397 = vsub.f32 %v395, %v396
    %v398 = vand.u32 %v397, 4294901760
    %399 = vmatpush.msra.mxu0 %v398
    %v400 = vand.u32 %v235, 4294901760
    %v401 = vsub.f32 %v235, %v400
    %v402 = vand.u32 %v401, 4294901760
    %v403 = vsub.f32 %v401, %v402
    %v404 = vand.u32 %v403, 4294901760
    %405 = vmatpush.msra.mxu0 %v404
    %v406 = vand.u32 %v210, 4294901760
    %v407 = vsub.f32 %v210, %v406
    %v408 = vand.u32 %v407, 4294901760
    %v409 = vsub.f32 %v407, %v408
    %v410 = vand.u32 %v409, 4294901760
    %411 = vmatpush.msra.mxu0 %v410
    %v412 = vand.u32 %v198, 4294901760
    %v413 = vsub.f32 %v198, %v412
    %v414 = vand.u32 %v413, 4294901760
    %v415 = vsub.f32 %v413, %v414
    %v416 = vand.u32 %v415, 4294901760
    %417 = vmatpush.msra.mxu0 %v416
    %v418 = vand.u32 %v161, 4294901760
    %v419 = vsub.f32 %v161, %v418
    %v420 = vand.u32 %v419, 4294901760
    %v421 = vsub.f32 %v419, %v420
    %v422 = vand.u32 %v421, 4294901760
    %423 = vmatpush.msra.mxu0 %v422
    %v424 = vand.u32 %v124, 4294901760
    %v425 = vsub.f32 %v124, %v424
    %v426 = vand.u32 %v425, 4294901760
    %v427 = vsub.f32 %v425, %v426
    %v428 = vand.u32 %v427, 4294901760
    %429 = vmatpush.msra.mxu0 %v428
    %v430 = vand.u32 %v91, 4294901760
    %v431 = vsub.f32 %v91, %v430
    %v432 = vand.u32 %v431, 4294901760
    %v433 = vsub.f32 %v431, %v432
    %v434 = vand.u32 %v433, 4294901760
    %435 = vmatpush.msra.mxu0 %v434
    %v436 = vand.u32 %v339, 4294901760
    %437 = vmatmul.f32.gmra.mxu0 %v436
    %v438 = vpop.f32.mrf.mxu0
    %v439 = vadd.f32 %v373, %v438
    %440 = vdwg.mxu0
    %441 = vmatpush.msra.mxu0 0.0
    %442 = vmatpush.msra.mxu0 0.0
    %443 = vmatpush.msra.mxu0 0.0
    %444 = vmatpush.msra.mxu0 0.0
    %445 = vmatpush.msra.mxu0 0.0
    %446 = vmatpush.msra.mxu0 0.0
    %447 = vmatpush.msra.mxu0 0.0
    %v448 = vand.u32 %v326, 4294901760
    %v449 = vsub.f32 %v326, %v448
    %450 = vmatpush.msra.mxu0 %v449
    %v451 = vand.u32 %v301, 4294901760
    %v452 = vsub.f32 %v301, %v451
    %453 = vmatpush.msra.mxu0 %v452
    %v454 = vand.u32 %v276, 4294901760
    %v455 = vsub.f32 %v276, %v454
    %456 = vmatpush.msra.mxu0 %v455
    %v457 = vand.u32 %v235, 4294901760
    %v458 = vsub.f32 %v235, %v457
    %459 = vmatpush.msra.mxu0 %v458
    %v460 = vand.u32 %v210, 4294901760
    %v461 = vsub.f32 %v210, %v460
    %462 = vmatpush.msra.mxu0 %v461
    %v463 = vand.u32 %v198, 4294901760
    %v464 = vsub.f32 %v198, %v463
    %465 = vmatpush.msra.mxu0 %v464
    %v466 = vand.u32 %v161, 4294901760
    %v467 = vsub.f32 %v161, %v466
    %468 = vmatpush.msra.mxu0 %v467
    %v469 = vand.u32 %v124, 4294901760
    %v470 = vsub.f32 %v124, %v469
    %471 = vmatpush.msra.mxu0 %v470
    %v472 = vand.u32 %v91, 4294901760
    %v473 = vsub.f32 %v91, %v472
    %474 = vmatpush.msra.mxu0 %v473
    %v475 = vand.u32 %v339, 4294901760
    %v476 = vsub.f32 %v339, %v475
    %477 = vmatmul.f32.gmra.mxu0 %v476
    %v478 = vpop.f32.mrf.mxu0
    %v479 = vadd.f32 %v439, %v478
    %480 = vdwg.mxu0
    %481 = vmatpush.msra.mxu0 0.0
    %482 = vmatpush.msra.mxu0 0.0
    %483 = vmatpush.msra.mxu0 0.0
    %484 = vmatpush.msra.mxu0 0.0
    %485 = vmatpush.msra.mxu0 0.0
    %486 = vmatpush.msra.mxu0 0.0
    %487 = vmatpush.msra.mxu0 0.0
    %v488 = vand.u32 %v326, 4294901760
    %489 = vmatpush.msra.mxu0 %v488
    %v490 = vand.u32 %v301, 4294901760
    %491 = vmatpush.msra.mxu0 %v490
    %v492 = vand.u32 %v276, 4294901760
    %493 = vmatpush.msra.mxu0 %v492
    %v494 = vand.u32 %v235, 4294901760
    %495 = vmatpush.msra.mxu0 %v494
    %v496 = vand.u32 %v210, 4294901760
    %497 = vmatpush.msra.mxu0 %v496
    %v498 = vand.u32 %v198, 4294901760
    %499 = vmatpush.msra.mxu0 %v498
    %v500 = vand.u32 %v161, 4294901760
    %501 = vmatpush.msra.mxu0 %v500
    %v502 = vand.u32 %v124, 4294901760
    %503 = vmatpush.msra.mxu0 %v502
    %v504 = vand.u32 %v91, 4294901760
    %505 = vmatpush.msra.mxu0 %v504
    %v506 = vand.u32 %v339, 4294901760
    %v507 = vsub.f32 %v339, %v506
    %v508 = vand.u32 %v507, 4294901760
    %509 = vmatmul.f32.gmra.mxu0 %v508
    %v510 = vpop.f32.mrf.mxu0
    %v511 = vadd.f32 %v479, %v510
    %512 = vdwg.mxu0
    %513 = vmatpush.msra.mxu0 0.0
    %514 = vmatpush.msra.mxu0 0.0
    %515 = vmatpush.msra.mxu0 0.0
    %516 = vmatpush.msra.mxu0 0.0
    %517 = vmatpush.msra.mxu0 0.0
    %518 = vmatpush.msra.mxu0 0.0
    %519 = vmatpush.msra.mxu0 0.0
    %v520 = vand.u32 %v326, 4294901760
    %v521 = vsub.f32 %v326, %v520
    %v522 = vand.u32 %v521, 4294901760
    %523 = vmatpush.msra.mxu0 %v522
    %v524 = vand.u32 %v301, 4294901760
    %v525 = vsub.f32 %v301, %v524
    %v526 = vand.u32 %v525, 4294901760
    %527 = vmatpush.msra.mxu0 %v526
    %v528 = vand.u32 %v276, 4294901760
    %v529 = vsub.f32 %v276, %v528
    %v530 = vand.u32 %v529, 4294901760
    %531 = vmatpush.msra.mxu0 %v530
    %v532 = vand.u32 %v235, 4294901760
    %v533 = vsub.f32 %v235, %v532
    %v534 = vand.u32 %v533, 4294901760
    %535 = vmatpush.msra.mxu0 %v534
    %v536 = vand.u32 %v210, 4294901760
    %v537 = vsub.f32 %v210, %v536
    %v538 = vand.u32 %v537, 4294901760
    %539 = vmatpush.msra.mxu0 %v538
    %v540 = vand.u32 %v198, 4294901760
    %v541 = vsub.f32 %v198, %v540
    %v542 = vand.u32 %v541, 4294901760
    %543 = vmatpush.msra.mxu0 %v542
    %v544 = vand.u32 %v161, 4294901760
    %v545 = vsub.f32 %v161, %v544
    %v546 = vand.u32 %v545, 4294901760
    %547 = vmatpush.msra.mxu0 %v546
    %v548 = vand.u32 %v124, 4294901760
    %v549 = vsub.f32 %v124, %v548
    %v550 = vand.u32 %v549, 4294901760
    %551 = vmatpush.msra.mxu0 %v550
    %v552 = vand.u32 %v91, 4294901760
    %v553 = vsub.f32 %v91, %v552
    %v554 = vand.u32 %v553, 4294901760
    %555 = vmatpush.msra.mxu0 %v554
    %v556 = vand.u32 %v339, 4294901760
    %557 = vmatmul.f32.gmra.mxu0 %v556
    %v558 = vpop.f32.mrf.mxu0
    %v559 = vadd.f32 %v511, %v558
    %560 = vdwg.mxu0
    %561 = vmatpush.msra.mxu0 0.0
    %562 = vmatpush.msra.mxu0 0.0
    %563 = vmatpush.msra.mxu0 0.0
    %564 = vmatpush.msra.mxu0 0.0
    %565 = vmatpush.msra.mxu0 0.0
    %566 = vmatpush.msra.mxu0 0.0
    %567 = vmatpush.msra.mxu0 0.0
    %v568 = vand.u32 %v326, 4294901760
    %569 = vmatpush.msra.mxu0 %v568
    %v570 = vand.u32 %v301, 4294901760
    %571 = vmatpush.msra.mxu0 %v570
    %v572 = vand.u32 %v276, 4294901760
    %573 = vmatpush.msra.mxu0 %v572
    %v574 = vand.u32 %v235, 4294901760
    %575 = vmatpush.msra.mxu0 %v574
    %v576 = vand.u32 %v210, 4294901760
    %577 = vmatpush.msra.mxu0 %v576
    %v578 = vand.u32 %v198, 4294901760
    %579 = vmatpush.msra.mxu0 %v578
    %v580 = vand.u32 %v161, 4294901760
    %581 = vmatpush.msra.mxu0 %v580
    %v582 = vand.u32 %v124, 4294901760
    %583 = vmatpush.msra.mxu0 %v582
    %v584 = vand.u32 %v91, 4294901760
    %585 = vmatpush.msra.mxu0 %v584
    %v586 = vand.u32 %v339, 4294901760
    %587 = vmatmul.f32.gmra.mxu0 %v586
    %v588 = vpop.f32.mrf.mxu0
    %v589 = vadd.f32 %v559, %v588
    %590 = vdwg.mxu0
    %591 = vmatpush.msra.mxu0 0.0
    %592 = vmatpush.msra.mxu0 0.0
    %593 = vmatpush.msra.mxu0 0.0
    %594 = vmatpush.msra.mxu0 0.0
    %595 = vmatpush.msra.mxu0 0.0
    %596 = vmatpush.msra.mxu0 0.0
    %597 = vmatpush.msra.mxu0 0.0
    %v598 = vand.u32 %v327, 4294901760
    %599 = vmatpush.msra.mxu0 %v598
    %v600 = vand.u32 %v302, 4294901760
    %601 = vmatpush.msra.mxu0 %v600
    %v602 = vand.u32 %v277, 4294901760
    %603 = vmatpush.msra.mxu0 %v602
    %v604 = vand.u32 %v236, 4294901760
    %605 = vmatpush.msra.mxu0 %v604
    %v606 = vand.u32 %v211, 4294901760
    %607 = vmatpush.msra.mxu0 %v606
    %v608 = vand.u32 %v199, 4294901760
    %609 = vmatpush.msra.mxu0 %v608
    %v610 = vand.u32 %v162, 4294901760
    %611 = vmatpush.msra.mxu0 %v610
    %v612 = vand.u32 %v125, 4294901760
    %613 = vmatpush.msra.mxu0 %v612
    %v614 = vand.u32 %v92, 4294901760
    %615 = vmatpush.msra.mxu0 %v614
    %v616 = vand.u32 %v339, 4294901760
    %v617 = vsub.f32 %v339, %v616
    %v618 = vand.u32 %v617, 4294901760
    %v619 = vsub.f32 %v617, %v618
    %v620 = vand.u32 %v619, 4294901760
    %621 = vmatmul.f32.gmra.mxu0 %v620
    %v622 = vpop.f32.mrf.mxu0
    %v623 = vadd.f32 %v335, %v622
    %624 = vdwg.mxu0
    %625 = vmatpush.msra.mxu0 0.0
    %626 = vmatpush.msra.mxu0 0.0
    %627 = vmatpush.msra.mxu0 0.0
    %628 = vmatpush.msra.mxu0 0.0
    %629 = vmatpush.msra.mxu0 0.0
    %630 = vmatpush.msra.mxu0 0.0
    %631 = vmatpush.msra.mxu0 0.0
    %v632 = vand.u32 %v327, 4294901760
    %v633 = vsub.f32 %v327, %v632
    %v634 = vand.u32 %v633, 4294901760
    %v635 = vsub.f32 %v633, %v634
    %v636 = vand.u32 %v635, 4294901760
    %637 = vmatpush.msra.mxu0 %v636
    %v638 = vand.u32 %v302, 4294901760
    %v639 = vsub.f32 %v302, %v638
    %v640 = vand.u32 %v639, 4294901760
    %v641 = vsub.f32 %v639, %v640
    %v642 = vand.u32 %v641, 4294901760
    %643 = vmatpush.msra.mxu0 %v642
    %v644 = vand.u32 %v277, 4294901760
    %v645 = vsub.f32 %v277, %v644
    %v646 = vand.u32 %v645, 4294901760
    %v647 = vsub.f32 %v645, %v646
    %v648 = vand.u32 %v647, 4294901760
    %649 = vmatpush.msra.mxu0 %v648
    %v650 = vand.u32 %v236, 4294901760
    %v651 = vsub.f32 %v236, %v650
    %v652 = vand.u32 %v651, 4294901760
    %v653 = vsub.f32 %v651, %v652
    %v654 = vand.u32 %v653, 4294901760
    %655 = vmatpush.msra.mxu0 %v654
    %v656 = vand.u32 %v211, 4294901760
    %v657 = vsub.f32 %v211, %v656
    %v658 = vand.u32 %v657, 4294901760
    %v659 = vsub.f32 %v657, %v658
    %v660 = vand.u32 %v659, 4294901760
    %661 = vmatpush.msra.mxu0 %v660
    %v662 = vand.u32 %v199, 4294901760
    %v663 = vsub.f32 %v199, %v662
    %v664 = vand.u32 %v663, 4294901760
    %v665 = vsub.f32 %v663, %v664
    %v666 = vand.u32 %v665, 4294901760
    %667 = vmatpush.msra.mxu0 %v666
    %v668 = vand.u32 %v162, 4294901760
    %v669 = vsub.f32 %v162, %v668
    %v670 = vand.u32 %v669, 4294901760
    %v671 = vsub.f32 %v669, %v670
    %v672 = vand.u32 %v671, 4294901760
    %673 = vmatpush.msra.mxu0 %v672
    %v674 = vand.u32 %v125, 4294901760
    %v675 = vsub.f32 %v125, %v674
    %v676 = vand.u32 %v675, 4294901760
    %v677 = vsub.f32 %v675, %v676
    %v678 = vand.u32 %v677, 4294901760
    %679 = vmatpush.msra.mxu0 %v678
    %v680 = vand.u32 %v92, 4294901760
    %v681 = vsub.f32 %v92, %v680
    %v682 = vand.u32 %v681, 4294901760
    %v683 = vsub.f32 %v681, %v682
    %v684 = vand.u32 %v683, 4294901760
    %685 = vmatpush.msra.mxu0 %v684
    %v686 = vand.u32 %v339, 4294901760
    %687 = vmatmul.f32.gmra.mxu0 %v686
    %v688 = vpop.f32.mrf.mxu0
    %v689 = vadd.f32 %v623, %v688
    %690 = vdwg.mxu0
    %691 = vmatpush.msra.mxu0 0.0
    %692 = vmatpush.msra.mxu0 0.0
    %693 = vmatpush.msra.mxu0 0.0
    %694 = vmatpush.msra.mxu0 0.0
    %695 = vmatpush.msra.mxu0 0.0
    %696 = vmatpush.msra.mxu0 0.0
    %697 = vmatpush.msra.mxu0 0.0
    %v698 = vand.u32 %v327, 4294901760
    %v699 = vsub.f32 %v327, %v698
    %700 = vmatpush.msra.mxu0 %v699
    %v701 = vand.u32 %v302, 4294901760
    %v702 = vsub.f32 %v302, %v701
    %703 = vmatpush.msra.mxu0 %v702
    %v704 = vand.u32 %v277, 4294901760
    %v705 = vsub.f32 %v277, %v704
    %706 = vmatpush.msra.mxu0 %v705
    %v707 = vand.u32 %v236, 4294901760
    %v708 = vsub.f32 %v236, %v707
    %709 = vmatpush.msra.mxu0 %v708
    %v710 = vand.u32 %v211, 4294901760
    %v711 = vsub.f32 %v211, %v710
    %712 = vmatpush.msra.mxu0 %v711
    %v713 = vand.u32 %v199, 4294901760
    %v714 = vsub.f32 %v199, %v713
    %715 = vmatpush.msra.mxu0 %v714
    %v716 = vand.u32 %v162, 4294901760
    %v717 = vsub.f32 %v162, %v716
    %718 = vmatpush.msra.mxu0 %v717
    %v719 = vand.u32 %v125, 4294901760
    %v720 = vsub.f32 %v125, %v719
    %721 = vmatpush.msra.mxu0 %v720
    %v722 = vand.u32 %v92, 4294901760
    %v723 = vsub.f32 %v92, %v722
    %724 = vmatpush.msra.mxu0 %v723
    %v725 = vand.u32 %v339, 4294901760
    %v726 = vsub.f32 %v339, %v725
    %727 = vmatmul.f32.gmra.mxu0 %v726
    %v728 = vpop.f32.mrf.mxu0
    %v729 = vadd.f32 %v689, %v728
    %730 = vdwg.mxu0
    %731 = vmatpush.msra.mxu0 0.0
    %732 = vmatpush.msra.mxu0 0.0
    %733 = vmatpush.msra.mxu0 0.0
    %734 = vmatpush.msra.mxu0 0.0
    %735 = vmatpush.msra.mxu0 0.0
    %736 = vmatpush.msra.mxu0 0.0
    %737 = vmatpush.msra.mxu0 0.0
    %v738 = vand.u32 %v327, 4294901760
    %739 = vmatpush.msra.mxu0 %v738
    %v740 = vand.u32 %v302, 4294901760
    %741 = vmatpush.msra.mxu0 %v740
    %v742 = vand.u32 %v277, 4294901760
    %743 = vmatpush.msra.mxu0 %v742
    %v744 = vand.u32 %v236, 4294901760
    %745 = vmatpush.msra.mxu0 %v744
    %v746 = vand.u32 %v211, 4294901760
    %747 = vmatpush.msra.mxu0 %v746
    %v748 = vand.u32 %v199, 4294901760
    %749 = vmatpush.msra.mxu0 %v748
    %v750 = vand.u32 %v162, 4294901760
    %751 = vmatpush.msra.mxu0 %v750
    %v752 = vand.u32 %v125, 4294901760
    %753 = vmatpush.msra.mxu0 %v752
    %v754 = vand.u32 %v92, 4294901760
    %755 = vmatpush.msra.mxu0 %v754
    %v756 = vand.u32 %v339, 4294901760
    %v757 = vsub.f32 %v339, %v756
    %v758 = vand.u32 %v757, 4294901760
    %759 = vmatmul.f32.gmra.mxu0 %v758
    %v760 = vpop.f32.mrf.mxu0
    %v761 = vadd.f32 %v729, %v760
    %762 = vdwg.mxu0
    %763 = vmatpush.msra.mxu0 0.0
    %764 = vmatpush.msra.mxu0 0.0
    %765 = vmatpush.msra.mxu0 0.0
    %766 = vmatpush.msra.mxu0 0.0
    %767 = vmatpush.msra.mxu0 0.0
    %768 = vmatpush.msra.mxu0 0.0
    %769 = vmatpush.msra.mxu0 0.0
    %v770 = vand.u32 %v327, 4294901760
    %v771 = vsub.f32 %v327, %v770
    %v772 = vand.u32 %v771, 4294901760
    %773 = vmatpush.msra.mxu0 %v772
    %v774 = vand.u32 %v302, 4294901760
    %v775 = vsub.f32 %v302, %v774
    %v776 = vand.u32 %v775, 4294901760
    %777 = vmatpush.msra.mxu0 %v776
    %v778 = vand.u32 %v277, 4294901760
    %v779 = vsub.f32 %v277, %v778
    %v780 = vand.u32 %v779, 4294901760
    %781 = vmatpush.msra.mxu0 %v780
    %v782 = vand.u32 %v236, 4294901760
    %v783 = vsub.f32 %v236, %v782
    %v784 = vand.u32 %v783, 4294901760
    %785 = vmatpush.msra.mxu0 %v784
    %v786 = vand.u32 %v211, 4294901760
    %v787 = vsub.f32 %v211, %v786
    %v788 = vand.u32 %v787, 4294901760
    %789 = vmatpush.msra.mxu0 %v788
    %v790 = vand.u32 %v199, 4294901760
    %v791 = vsub.f32 %v199, %v790
    %v792 = vand.u32 %v791, 4294901760
    %793 = vmatpush.msra.mxu0 %v792
    %v794 = vand.u32 %v162, 4294901760
    %v795 = vsub.f32 %v162, %v794
    %v796 = vand.u32 %v795, 4294901760
    %797 = vmatpush.msra.mxu0 %v796
    %v798 = vand.u32 %v125, 4294901760
    %v799 = vsub.f32 %v125, %v798
    %v800 = vand.u32 %v799, 4294901760
    %801 = vmatpush.msra.mxu0 %v800
    %v802 = vand.u32 %v92, 4294901760
    %v803 = vsub.f32 %v92, %v802
    %v804 = vand.u32 %v803, 4294901760
    %805 = vmatpush.msra.mxu0 %v804
    %v806 = vand.u32 %v339, 4294901760
    %807 = vmatmul.f32.gmra.mxu0 %v806
    %v808 = vpop.f32.mrf.mxu0
    %v809 = vadd.f32 %v761, %v808
    %810 = vdwg.mxu0
    %811 = vmatpush.msra.mxu0 0.0
    %812 = vmatpush.msra.mxu0 0.0
    %813 = vmatpush.msra.mxu0 0.0
    %814 = vmatpush.msra.mxu0 0.0
    %815 = vmatpush.msra.mxu0 0.0
    %816 = vmatpush.msra.mxu0 0.0
    %817 = vmatpush.msra.mxu0 0.0
    %v818 = vand.u32 %v327, 4294901760
    %819 = vmatpush.msra.mxu0 %v818
    %v820 = vand.u32 %v302, 4294901760
    %821 = vmatpush.msra.mxu0 %v820
    %v822 = vand.u32 %v277, 4294901760
    %823 = vmatpush.msra.mxu0 %v822
    %v824 = vand.u32 %v236, 4294901760
    %825 = vmatpush.msra.mxu0 %v824
    %v826 = vand.u32 %v211, 4294901760
    %827 = vmatpush.msra.mxu0 %v826
    %v828 = vand.u32 %v199, 4294901760
    %829 = vmatpush.msra.mxu0 %v828
    %v830 = vand.u32 %v162, 4294901760
    %831 = vmatpush.msra.mxu0 %v830
    %v832 = vand.u32 %v125, 4294901760
    %833 = vmatpush.msra.mxu0 %v832
    %v834 = vand.u32 %v92, 4294901760
    %835 = vmatpush.msra.mxu0 %v834
    %v836 = vand.u32 %v339, 4294901760
    %837 = vmatmul.f32.gmra.mxu0 %v836
    %v838 = vpop.f32.mrf.mxu0
    %v839 = vadd.f32 %v809, %v838
    %840 = vdwg.mxu0
    %841 = vmatpush.msra.mxu0 0.0
    %842 = vmatpush.msra.mxu0 0.0
    %843 = vmatpush.msra.mxu0 0.0
    %844 = vmatpush.msra.mxu0 0.0
    %845 = vmatpush.msra.mxu0 0.0
    %846 = vmatpush.msra.mxu0 0.0
    %847 = vmatpush.msra.mxu0 0.0
    %v848 = vand.u32 %v328, 4294901760
    %849 = vmatpush.msra.mxu0 %v848
    %v850 = vand.u32 %v303, 4294901760
    %851 = vmatpush.msra.mxu0 %v850
    %v852 = vand.u32 %v278, 4294901760
    %853 = vmatpush.msra.mxu0 %v852
    %v854 = vand.u32 %v237, 4294901760
    %855 = vmatpush.msra.mxu0 %v854
    %v856 = vand.u32 %v212, 4294901760
    %857 = vmatpush.msra.mxu0 %v856
    %v858 = vand.u32 %v200, 4294901760
    %859 = vmatpush.msra.mxu0 %v858
    %v860 = vand.u32 %v163, 4294901760
    %861 = vmatpush.msra.mxu0 %v860
    %v862 = vand.u32 %v126, 4294901760
    %863 = vmatpush.msra.mxu0 %v862
    %v864 = vand.u32 %v93, 4294901760
    %865 = vmatpush.msra.mxu0 %v864
    %v866 = vand.u32 %v339, 4294901760
    %v867 = vsub.f32 %v339, %v866
    %v868 = vand.u32 %v867, 4294901760
    %v869 = vsub.f32 %v867, %v868
    %v870 = vand.u32 %v869, 4294901760
    %871 = vmatmul.f32.gmra.mxu0 %v870
    %v872 = vpop.f32.mrf.mxu0
    %v873 = vadd.f32 %v335, %v872
    %874 = vdwg.mxu0
    %875 = vmatpush.msra.mxu0 0.0
    %876 = vmatpush.msra.mxu0 0.0
    %877 = vmatpush.msra.mxu0 0.0
    %878 = vmatpush.msra.mxu0 0.0
    %879 = vmatpush.msra.mxu0 0.0
    %880 = vmatpush.msra.mxu0 0.0
    %881 = vmatpush.msra.mxu0 0.0
    %v882 = vand.u32 %v328, 4294901760
    %v883 = vsub.f32 %v328, %v882
    %v884 = vand.u32 %v883, 4294901760
    %v885 = vsub.f32 %v883, %v884
    %v886 = vand.u32 %v885, 4294901760
    %887 = vmatpush.msra.mxu0 %v886
    %v888 = vand.u32 %v303, 4294901760
    %v889 = vsub.f32 %v303, %v888
    %v890 = vand.u32 %v889, 4294901760
    %v891 = vsub.f32 %v889, %v890
    %v892 = vand.u32 %v891, 4294901760
    %893 = vmatpush.msra.mxu0 %v892
    %v894 = vand.u32 %v278, 4294901760
    %v895 = vsub.f32 %v278, %v894
    %v896 = vand.u32 %v895, 4294901760
    %v897 = vsub.f32 %v895, %v896
    %v898 = vand.u32 %v897, 4294901760
    %899 = vmatpush.msra.mxu0 %v898
    %v900 = vand.u32 %v237, 4294901760
    %v901 = vsub.f32 %v237, %v900
    %v902 = vand.u32 %v901, 4294901760
    %v903 = vsub.f32 %v901, %v902
    %v904 = vand.u32 %v903, 4294901760
    %905 = vmatpush.msra.mxu0 %v904
    %v906 = vand.u32 %v212, 4294901760
    %v907 = vsub.f32 %v212, %v906
    %v908 = vand.u32 %v907, 4294901760
    %v909 = vsub.f32 %v907, %v908
    %v910 = vand.u32 %v909, 4294901760
    %911 = vmatpush.msra.mxu0 %v910
    %v912 = vand.u32 %v200, 4294901760
    %v913 = vsub.f32 %v200, %v912
    %v914 = vand.u32 %v913, 4294901760
    %v915 = vsub.f32 %v913, %v914
    %v916 = vand.u32 %v915, 4294901760
    %917 = vmatpush.msra.mxu0 %v916
    %v918 = vand.u32 %v163, 4294901760
    %v919 = vsub.f32 %v163, %v918
    %v920 = vand.u32 %v919, 4294901760
    %v921 = vsub.f32 %v919, %v920
    %v922 = vand.u32 %v921, 4294901760
    %923 = vmatpush.msra.mxu0 %v922
    %v924 = vand.u32 %v126, 4294901760
    %v925 = vsub.f32 %v126, %v924
    %v926 = vand.u32 %v925, 4294901760
    %v927 = vsub.f32 %v925, %v926
    %v928 = vand.u32 %v927, 4294901760
    %929 = vmatpush.msra.mxu0 %v928
    %v930 = vand.u32 %v93, 4294901760
    %v931 = vsub.f32 %v93, %v930
    %v932 = vand.u32 %v931, 4294901760
    %v933 = vsub.f32 %v931, %v932
    %v934 = vand.u32 %v933, 4294901760
    %935 = vmatpush.msra.mxu0 %v934
    %v936 = vand.u32 %v339, 4294901760
    %937 = vmatmul.f32.gmra.mxu0 %v936
    %v938 = vpop.f32.mrf.mxu0
    %v939 = vadd.f32 %v873, %v938
    %940 = vdwg.mxu0
    %941 = vmatpush.msra.mxu0 0.0
    %942 = vmatpush.msra.mxu0 0.0
    %943 = vmatpush.msra.mxu0 0.0
    %944 = vmatpush.msra.mxu0 0.0
    %945 = vmatpush.msra.mxu0 0.0
    %946 = vmatpush.msra.mxu0 0.0
    %947 = vmatpush.msra.mxu0 0.0
    %v948 = vand.u32 %v328, 4294901760
    %v949 = vsub.f32 %v328, %v948
    %950 = vmatpush.msra.mxu0 %v949
    %v951 = vand.u32 %v303, 4294901760
    %v952 = vsub.f32 %v303, %v951
    %953 = vmatpush.msra.mxu0 %v952
    %v954 = vand.u32 %v278, 4294901760
    %v955 = vsub.f32 %v278, %v954
    %956 = vmatpush.msra.mxu0 %v955
    %v957 = vand.u32 %v237, 4294901760
    %v958 = vsub.f32 %v237, %v957
    %959 = vmatpush.msra.mxu0 %v958
    %v960 = vand.u32 %v212, 4294901760
    %v961 = vsub.f32 %v212, %v960
    %962 = vmatpush.msra.mxu0 %v961
    %v963 = vand.u32 %v200, 4294901760
    %v964 = vsub.f32 %v200, %v963
    %965 = vmatpush.msra.mxu0 %v964
    %v966 = vand.u32 %v163, 4294901760
    %v967 = vsub.f32 %v163, %v966
    %968 = vmatpush.msra.mxu0 %v967
    %v969 = vand.u32 %v126, 4294901760
    %v970 = vsub.f32 %v126, %v969
    %971 = vmatpush.msra.mxu0 %v970
    %v972 = vand.u32 %v93, 4294901760
    %v973 = vsub.f32 %v93, %v972
    %974 = vmatpush.msra.mxu0 %v973
    %v975 = vand.u32 %v339, 4294901760
    %v976 = vsub.f32 %v339, %v975
    %977 = vmatmul.f32.gmra.mxu0 %v976
    %v978 = vpop.f32.mrf.mxu0
    %v979 = vadd.f32 %v939, %v978
    %980 = vdwg.mxu0
    %981 = vmatpush.msra.mxu0 0.0
    %982 = vmatpush.msra.mxu0 0.0
    %983 = vmatpush.msra.mxu0 0.0
    %984 = vmatpush.msra.mxu0 0.0
    %985 = vmatpush.msra.mxu0 0.0
    %986 = vmatpush.msra.mxu0 0.0
    %987 = vmatpush.msra.mxu0 0.0
    %v988 = vand.u32 %v328, 4294901760
    %989 = vmatpush.msra.mxu0 %v988
    %v990 = vand.u32 %v303, 4294901760
    %991 = vmatpush.msra.mxu0 %v990
    %v992 = vand.u32 %v278, 4294901760
    %993 = vmatpush.msra.mxu0 %v992
    %v994 = vand.u32 %v237, 4294901760
    %995 = vmatpush.msra.mxu0 %v994
    %v996 = vand.u32 %v212, 4294901760
    %997 = vmatpush.msra.mxu0 %v996
    %v998 = vand.u32 %v200, 4294901760
    %999 = vmatpush.msra.mxu0 %v998
    %v1000 = vand.u32 %v163, 4294901760
    %1001 = vmatpush.msra.mxu0 %v1000
    %v1002 = vand.u32 %v126, 4294901760
    %1003 = vmatpush.msra.mxu0 %v1002
    %v1004 = vand.u32 %v93, 4294901760
    %1005 = vmatpush.msra.mxu0 %v1004
    %v1006 = vand.u32 %v339, 4294901760
    %v1007 = vsub.f32 %v339, %v1006
    %v1008 = vand.u32 %v1007, 4294901760
    %1009 = vmatmul.f32.gmra.mxu0 %v1008
    %v1010 = vpop.f32.mrf.mxu0
    %v1011 = vadd.f32 %v979, %v1010
    %1012 = vdwg.mxu0
    %1013 = vmatpush.msra.mxu0 0.0
    %1014 = vmatpush.msra.mxu0 0.0
    %1015 = vmatpush.msra.mxu0 0.0
    %1016 = vmatpush.msra.mxu0 0.0
    %1017 = vmatpush.msra.mxu0 0.0
    %1018 = vmatpush.msra.mxu0 0.0
    %1019 = vmatpush.msra.mxu0 0.0
    %v1020 = vand.u32 %v328, 4294901760
    %v1021 = vsub.f32 %v328, %v1020
    %v1022 = vand.u32 %v1021, 4294901760
    %1023 = vmatpush.msra.mxu0 %v1022
    %v1024 = vand.u32 %v303, 4294901760
    %v1025 = vsub.f32 %v303, %v1024
    %v1026 = vand.u32 %v1025, 4294901760
    %1027 = vmatpush.msra.mxu0 %v1026
    %v1028 = vand.u32 %v278, 4294901760
    %v1029 = vsub.f32 %v278, %v1028
    %v1030 = vand.u32 %v1029, 4294901760
    %1031 = vmatpush.msra.mxu0 %v1030
    %v1032 = vand.u32 %v237, 4294901760
    %v1033 = vsub.f32 %v237, %v1032
    %v1034 = vand.u32 %v1033, 4294901760
    %1035 = vmatpush.msra.mxu0 %v1034
    %v1036 = vand.u32 %v212, 4294901760
    %v1037 = vsub.f32 %v212, %v1036
    %v1038 = vand.u32 %v1037, 4294901760
    %1039 = vmatpush.msra.mxu0 %v1038
    %v1040 = vand.u32 %v200, 4294901760
    %v1041 = vsub.f32 %v200, %v1040
    %v1042 = vand.u32 %v1041, 4294901760
    %1043 = vmatpush.msra.mxu0 %v1042
    %v1044 = vand.u32 %v163, 4294901760
    %v1045 = vsub.f32 %v163, %v1044
    %v1046 = vand.u32 %v1045, 4294901760
    %1047 = vmatpush.msra.mxu0 %v1046
    %v1048 = vand.u32 %v126, 4294901760
    %v1049 = vsub.f32 %v126, %v1048
    %v1050 = vand.u32 %v1049, 4294901760
    %1051 = vmatpush.msra.mxu0 %v1050
    %v1052 = vand.u32 %v93, 4294901760
    %v1053 = vsub.f32 %v93, %v1052
    %v1054 = vand.u32 %v1053, 4294901760
    %1055 = vmatpush.msra.mxu0 %v1054
    %v1056 = vand.u32 %v339, 4294901760
    %1057 = vmatmul.f32.gmra.mxu0 %v1056
    %v1058 = vpop.f32.mrf.mxu0
    %v1059 = vadd.f32 %v1011, %v1058
    %1060 = vdwg.mxu0
    %1061 = vmatpush.msra.mxu0 0.0
    %1062 = vmatpush.msra.mxu0 0.0
    %1063 = vmatpush.msra.mxu0 0.0
    %1064 = vmatpush.msra.mxu0 0.0
    %1065 = vmatpush.msra.mxu0 0.0
    %1066 = vmatpush.msra.mxu0 0.0
    %1067 = vmatpush.msra.mxu0 0.0
    %v1068 = vand.u32 %v328, 4294901760
    %1069 = vmatpush.msra.mxu0 %v1068
    %v1070 = vand.u32 %v303, 4294901760
    %1071 = vmatpush.msra.mxu0 %v1070
    %v1072 = vand.u32 %v278, 4294901760
    %1073 = vmatpush.msra.mxu0 %v1072
    %v1074 = vand.u32 %v237, 4294901760
    %1075 = vmatpush.msra.mxu0 %v1074
    %v1076 = vand.u32 %v212, 4294901760
    %1077 = vmatpush.msra.mxu0 %v1076
    %v1078 = vand.u32 %v200, 4294901760
    %1079 = vmatpush.msra.mxu0 %v1078
    %v1080 = vand.u32 %v163, 4294901760
    %1081 = vmatpush.msra.mxu0 %v1080
    %v1082 = vand.u32 %v126, 4294901760
    %1083 = vmatpush.msra.mxu0 %v1082
    %v1084 = vand.u32 %v93, 4294901760
    %1085 = vmatpush.msra.mxu0 %v1084
    %v1086 = vand.u32 %v339, 4294901760
    %1087 = vmatmul.f32.gmra.mxu0 %v1086
    %v1088 = vpop.f32.mrf.mxu0
    %v1089 = vadd.f32 %v1059, %v1088
    %1090 = vdwg.mxu0
    %1091 = vmatpush.msra.mxu0 0.0
    %1092 = vmatpush.msra.mxu0 0.0
    %1093 = vmatpush.msra.mxu0 0.0
    %1094 = vmatpush.msra.mxu0 0.0
    %1095 = vmatpush.msra.mxu0 0.0
    %1096 = vmatpush.msra.mxu0 0.0
    %1097 = vmatpush.msra.mxu0 0.0
    %v1098 = vand.u32 %v329, 4294901760
    %1099 = vmatpush.msra.mxu0 %v1098
    %v1100 = vand.u32 %v304, 4294901760
    %1101 = vmatpush.msra.mxu0 %v1100
    %v1102 = vand.u32 %v279, 4294901760
    %1103 = vmatpush.msra.mxu0 %v1102
    %v1104 = vand.u32 %v238, 4294901760
    %1105 = vmatpush.msra.mxu0 %v1104
    %v1106 = vand.u32 %v213, 4294901760
    %1107 = vmatpush.msra.mxu0 %v1106
    %v1108 = vand.u32 %v201, 4294901760
    %1109 = vmatpush.msra.mxu0 %v1108
    %v1110 = vand.u32 %v164, 4294901760
    %1111 = vmatpush.msra.mxu0 %v1110
    %v1112 = vand.u32 %v127, 4294901760
    %1113 = vmatpush.msra.mxu0 %v1112
    %v1114 = vand.u32 %v94, 4294901760
    %1115 = vmatpush.msra.mxu0 %v1114
    %v1116 = vand.u32 %v339, 4294901760
    %v1117 = vsub.f32 %v339, %v1116
    %v1118 = vand.u32 %v1117, 4294901760
    %v1119 = vsub.f32 %v1117, %v1118
    %v1120 = vand.u32 %v1119, 4294901760
    %1121 = vmatmul.f32.gmra.mxu0 %v1120
    %v1122 = vpop.f32.mrf.mxu0
    %v1123 = vadd.f32 %v335, %v1122
    %1124 = vdwg.mxu0
    %1125 = vmatpush.msra.mxu0 0.0
    %1126 = vmatpush.msra.mxu0 0.0
    %1127 = vmatpush.msra.mxu0 0.0
    %1128 = vmatpush.msra.mxu0 0.0
    %1129 = vmatpush.msra.mxu0 0.0
    %1130 = vmatpush.msra.mxu0 0.0
    %1131 = vmatpush.msra.mxu0 0.0
    %v1132 = vand.u32 %v329, 4294901760
    %v1133 = vsub.f32 %v329, %v1132
    %v1134 = vand.u32 %v1133, 4294901760
    %v1135 = vsub.f32 %v1133, %v1134
    %v1136 = vand.u32 %v1135, 4294901760
    %1137 = vmatpush.msra.mxu0 %v1136
    %v1138 = vand.u32 %v304, 4294901760
    %v1139 = vsub.f32 %v304, %v1138
    %v1140 = vand.u32 %v1139, 4294901760
    %v1141 = vsub.f32 %v1139, %v1140
    %v1142 = vand.u32 %v1141, 4294901760
    %1143 = vmatpush.msra.mxu0 %v1142
    %v1144 = vand.u32 %v279, 4294901760
    %v1145 = vsub.f32 %v279, %v1144
    %v1146 = vand.u32 %v1145, 4294901760
    %v1147 = vsub.f32 %v1145, %v1146
    %v1148 = vand.u32 %v1147, 4294901760
    %1149 = vmatpush.msra.mxu0 %v1148
    %v1150 = vand.u32 %v238, 4294901760
    %v1151 = vsub.f32 %v238, %v1150
    %v1152 = vand.u32 %v1151, 4294901760
    %v1153 = vsub.f32 %v1151, %v1152
    %v1154 = vand.u32 %v1153, 4294901760
    %1155 = vmatpush.msra.mxu0 %v1154
    %v1156 = vand.u32 %v213, 4294901760
    %v1157 = vsub.f32 %v213, %v1156
    %v1158 = vand.u32 %v1157, 4294901760
    %v1159 = vsub.f32 %v1157, %v1158
    %v1160 = vand.u32 %v1159, 4294901760
    %1161 = vmatpush.msra.mxu0 %v1160
    %v1162 = vand.u32 %v201, 4294901760
    %v1163 = vsub.f32 %v201, %v1162
    %v1164 = vand.u32 %v1163, 4294901760
    %v1165 = vsub.f32 %v1163, %v1164
    %v1166 = vand.u32 %v1165, 4294901760
    %1167 = vmatpush.msra.mxu0 %v1166
    %v1168 = vand.u32 %v164, 4294901760
    %v1169 = vsub.f32 %v164, %v1168
    %v1170 = vand.u32 %v1169, 4294901760
    %v1171 = vsub.f32 %v1169, %v1170
    %v1172 = vand.u32 %v1171, 4294901760
    %1173 = vmatpush.msra.mxu0 %v1172
    %v1174 = vand.u32 %v127, 4294901760
    %v1175 = vsub.f32 %v127, %v1174
    %v1176 = vand.u32 %v1175, 4294901760
    %v1177 = vsub.f32 %v1175, %v1176
    %v1178 = vand.u32 %v1177, 4294901760
    %1179 = vmatpush.msra.mxu0 %v1178
    %v1180 = vand.u32 %v94, 4294901760
    %v1181 = vsub.f32 %v94, %v1180
    %v1182 = vand.u32 %v1181, 4294901760
    %v1183 = vsub.f32 %v1181, %v1182
    %v1184 = vand.u32 %v1183, 4294901760
    %1185 = vmatpush.msra.mxu0 %v1184
    %v1186 = vand.u32 %v339, 4294901760
    %1187 = vmatmul.f32.gmra.mxu0 %v1186
    %v1188 = vpop.f32.mrf.mxu0
    %v1189 = vadd.f32 %v1123, %v1188
    %1190 = vdwg.mxu0
    %1191 = vmatpush.msra.mxu0 0.0
    %1192 = vmatpush.msra.mxu0 0.0
    %1193 = vmatpush.msra.mxu0 0.0
    %1194 = vmatpush.msra.mxu0 0.0
    %1195 = vmatpush.msra.mxu0 0.0
    %1196 = vmatpush.msra.mxu0 0.0
    %1197 = vmatpush.msra.mxu0 0.0
    %v1198 = vand.u32 %v329, 4294901760
    %v1199 = vsub.f32 %v329, %v1198
    %1200 = vmatpush.msra.mxu0 %v1199
    %v1201 = vand.u32 %v304, 4294901760
    %v1202 = vsub.f32 %v304, %v1201
    %1203 = vmatpush.msra.mxu0 %v1202
    %v1204 = vand.u32 %v279, 4294901760
    %v1205 = vsub.f32 %v279, %v1204
    %1206 = vmatpush.msra.mxu0 %v1205
    %v1207 = vand.u32 %v238, 4294901760
    %v1208 = vsub.f32 %v238, %v1207
    %1209 = vmatpush.msra.mxu0 %v1208
    %v1210 = vand.u32 %v213, 4294901760
    %v1211 = vsub.f32 %v213, %v1210
    %1212 = vmatpush.msra.mxu0 %v1211
    %v1213 = vand.u32 %v201, 4294901760
    %v1214 = vsub.f32 %v201, %v1213
    %1215 = vmatpush.msra.mxu0 %v1214
    %v1216 = vand.u32 %v164, 4294901760
    %v1217 = vsub.f32 %v164, %v1216
    %1218 = vmatpush.msra.mxu0 %v1217
    %v1219 = vand.u32 %v127, 4294901760
    %v1220 = vsub.f32 %v127, %v1219
    %1221 = vmatpush.msra.mxu0 %v1220
    %v1222 = vand.u32 %v94, 4294901760
    %v1223 = vsub.f32 %v94, %v1222
    %1224 = vmatpush.msra.mxu0 %v1223
    %v1225 = vand.u32 %v339, 4294901760
    %v1226 = vsub.f32 %v339, %v1225
    %1227 = vmatmul.f32.gmra.mxu0 %v1226
    %v1228 = vpop.f32.mrf.mxu0
    %v1229 = vadd.f32 %v1189, %v1228
    %1230 = vdwg.mxu0
    %1231 = vmatpush.msra.mxu0 0.0
    %1232 = vmatpush.msra.mxu0 0.0
    %1233 = vmatpush.msra.mxu0 0.0
    %1234 = vmatpush.msra.mxu0 0.0
    %1235 = vmatpush.msra.mxu0 0.0
    %1236 = vmatpush.msra.mxu0 0.0
    %1237 = vmatpush.msra.mxu0 0.0
    %v1238 = vand.u32 %v329, 4294901760
    %1239 = vmatpush.msra.mxu0 %v1238
    %v1240 = vand.u32 %v304, 4294901760
    %1241 = vmatpush.msra.mxu0 %v1240
    %v1242 = vand.u32 %v279, 4294901760
    %1243 = vmatpush.msra.mxu0 %v1242
    %v1244 = vand.u32 %v238, 4294901760
    %1245 = vmatpush.msra.mxu0 %v1244
    %v1246 = vand.u32 %v213, 4294901760
    %1247 = vmatpush.msra.mxu0 %v1246
    %v1248 = vand.u32 %v201, 4294901760
    %1249 = vmatpush.msra.mxu0 %v1248
    %v1250 = vand.u32 %v164, 4294901760
    %1251 = vmatpush.msra.mxu0 %v1250
    %v1252 = vand.u32 %v127, 4294901760
    %1253 = vmatpush.msra.mxu0 %v1252
    %v1254 = vand.u32 %v94, 4294901760
    %1255 = vmatpush.msra.mxu0 %v1254
    %v1256 = vand.u32 %v339, 4294901760
    %v1257 = vsub.f32 %v339, %v1256
    %v1258 = vand.u32 %v1257, 4294901760
    %1259 = vmatmul.f32.gmra.mxu0 %v1258
    %v1260 = vpop.f32.mrf.mxu0
    %v1261 = vadd.f32 %v1229, %v1260
    %1262 = vdwg.mxu0
    %1263 = vmatpush.msra.mxu0 0.0
    %1264 = vmatpush.msra.mxu0 0.0
    %1265 = vmatpush.msra.mxu0 0.0
    %1266 = vmatpush.msra.mxu0 0.0
    %1267 = vmatpush.msra.mxu0 0.0
    %1268 = vmatpush.msra.mxu0 0.0
    %1269 = vmatpush.msra.mxu0 0.0
    %v1270 = vand.u32 %v329, 4294901760
    %v1271 = vsub.f32 %v329, %v1270
    %v1272 = vand.u32 %v1271, 4294901760
    %1273 = vmatpush.msra.mxu0 %v1272
    %v1274 = vand.u32 %v304, 4294901760
    %v1275 = vsub.f32 %v304, %v1274
    %v1276 = vand.u32 %v1275, 4294901760
    %1277 = vmatpush.msra.mxu0 %v1276
    %v1278 = vand.u32 %v279, 4294901760
    %v1279 = vsub.f32 %v279, %v1278
    %v1280 = vand.u32 %v1279, 4294901760
    %1281 = vmatpush.msra.mxu0 %v1280
    %v1282 = vand.u32 %v238, 4294901760
    %v1283 = vsub.f32 %v238, %v1282
    %v1284 = vand.u32 %v1283, 4294901760
    %1285 = vmatpush.msra.mxu0 %v1284
    %v1286 = vand.u32 %v213, 4294901760
    %v1287 = vsub.f32 %v213, %v1286
    %v1288 = vand.u32 %v1287, 4294901760
    %1289 = vmatpush.msra.mxu0 %v1288
    %v1290 = vand.u32 %v201, 4294901760
    %v1291 = vsub.f32 %v201, %v1290
    %v1292 = vand.u32 %v1291, 4294901760
    %1293 = vmatpush.msra.mxu0 %v1292
    %v1294 = vand.u32 %v164, 4294901760
    %v1295 = vsub.f32 %v164, %v1294
    %v1296 = vand.u32 %v1295, 4294901760
    %1297 = vmatpush.msra.mxu0 %v1296
    %v1298 = vand.u32 %v127, 4294901760
    %v1299 = vsub.f32 %v127, %v1298
    %v1300 = vand.u32 %v1299, 4294901760
    %1301 = vmatpush.msra.mxu0 %v1300
    %v1302 = vand.u32 %v94, 4294901760
    %v1303 = vsub.f32 %v94, %v1302
    %v1304 = vand.u32 %v1303, 4294901760
    %1305 = vmatpush.msra.mxu0 %v1304
    %v1306 = vand.u32 %v339, 4294901760
    %1307 = vmatmul.f32.gmra.mxu0 %v1306
    %v1308 = vpop.f32.mrf.mxu0
    %v1309 = vadd.f32 %v1261, %v1308
    %1310 = vdwg.mxu0
    %1311 = vmatpush.msra.mxu0 0.0
    %1312 = vmatpush.msra.mxu0 0.0
    %1313 = vmatpush.msra.mxu0 0.0
    %1314 = vmatpush.msra.mxu0 0.0
    %1315 = vmatpush.msra.mxu0 0.0
    %1316 = vmatpush.msra.mxu0 0.0
    %1317 = vmatpush.msra.mxu0 0.0
    %v1318 = vand.u32 %v329, 4294901760
    %1319 = vmatpush.msra.mxu0 %v1318
    %v1320 = vand.u32 %v304, 4294901760
    %1321 = vmatpush.msra.mxu0 %v1320
    %v1322 = vand.u32 %v279, 4294901760
    %1323 = vmatpush.msra.mxu0 %v1322
    %v1324 = vand.u32 %v238, 4294901760
    %1325 = vmatpush.msra.mxu0 %v1324
    %v1326 = vand.u32 %v213, 4294901760
    %1327 = vmatpush.msra.mxu0 %v1326
    %v1328 = vand.u32 %v201, 4294901760
    %1329 = vmatpush.msra.mxu0 %v1328
    %v1330 = vand.u32 %v164, 4294901760
    %1331 = vmatpush.msra.mxu0 %v1330
    %v1332 = vand.u32 %v127, 4294901760
    %1333 = vmatpush.msra.mxu0 %v1332
    %v1334 = vand.u32 %v94, 4294901760
    %1335 = vmatpush.msra.mxu0 %v1334
    %v1336 = vand.u32 %v339, 4294901760
    %1337 = vmatmul.f32.gmra.mxu0 %v1336
    %v1338 = vpop.f32.mrf.mxu0
    %v1339 = vadd.f32 %v1309, %v1338
    %1340 = vdwg.mxu0
    %v1341 = vmax.f32 %v589, 0.0
    %v1342 = vmax.f32 %v839, 0.0
    %v1343 = vmax.f32 %v1089, 0.0
    %v1344 = vmax.f32 %v1339, 0.0
    %v1345 = vld [vmem:[%s3] sm:$0xff]
    %v1346 = vadd.f32 %v1341, %v1342
    %1347 = vadd.xlane.f32.xlu0 %v1346
    %v1348 = vpop.xlane.xlu0 %1347
    %v1349 = vmul.f32 %v1348, %v1345
    %vm1350 = vcmask 80896
    %v1351 = vsel %vm1350, %v1349, 0.0
    %v1352 = vrot.slane %v1351, 4
    %v1353 = vadd.f32 %v1351, %v1352
    %v1354 = vrot.slane %v1353, 2
    %v1355 = vadd.f32 %v1353, %v1354
    %v1356 = vrot.slane %v1355, 1
    %v1357 = vadd.f32 %v1355, %v1356
    %v1358 = vadd.f32 %v1343, %v1344
    %1359 = vadd.xlane.f32.xlu0 %v1358
    %v1360 = vpop.xlane.xlu0 %1359
    %v1361 = vmul.f32 %v1360, %v1345
    %v1362 = vsel %vm1350, %v1361, 0.0
    %v1363 = vrot.slane %v1362, 4
    %v1364 = vadd.f32 %v1362, %v1363
    %v1365 = vrot.slane %v1364, 2
    %v1366 = vadd.f32 %v1364, %v1365
    %v1367 = vrot.slane %v1366, 1
    %v1368 = vadd.f32 %v1366, %v1367
    %vm1369 = vcmask 1040384
    %v1370 = vsel %vm1369, %v1357, %v1368
    %v1371 = vld [vmem:[%s4] sm:$0x1]
    %v1373 = vperm.slane %v1371, 0
    %v1375 = vadd.f32 %v1370, %v1373
    %vm1376 = vcmask 74752
    %1377 = vst.msk [vmem:[#allocation2] sm:$0x3] %vm1376, %v1375
    // Predicated region
    $region22: #{ignite_forward.1} parent=1 // pred_check
      _
    $region23: #{ignite_forward.1} parent=1 // pred_check_branch
      %1379 = sbr.rel (0) target = $region25
    $region24: #{ignite_forward.1} parent=1 // pred_region
      %1381 = vsyncadd [#allocation3], 0
      %s1383 = sshll.u32 [#allocation2], 4
      %s1384 = int_to_ptr.vmem [resolvable:$true] %s1383
      %s1385 = sshll.u32 %s5, 4
      %s1386 = int_to_ptr.hbm [resolvable:$true] %s1385
      %1388 = dma.vmem_to_hbm [thread:$0]  %s1384, 32, %s1386, [#allocation3]
    $region25: #{ignite_forward.1} parent=1 // pred_fallthru
      _
    // Predicated region
    $region26: #{ignite_forward.1} parent=1 // pred_check
      _
    $region27: #{ignite_forward.1} parent=1 // pred_check_branch
      %1390 = sbr.rel (0) target = $region29
    $region28: #{ignite_forward.1} parent=1 // pred_region
      %1392 = dma.done [#allocation3], 32
    $region29: #{ignite_forward.1} parent=1 // pred_fallthru
      _
    %1393 = vsyncpa [#allocation3], 1

</llo_original>
